<compile_context>
chip_gen: v7x
topology: tpu7x:2x2x1
jax: 0.10.0
libtpu: 0.0.40
codegen_flags: <defaults>
</compile_context>

<pallas_src>
import functools

import numpy as np
import jax
import jax.numpy as jnp
from jax.experimental import pallas as pl
from jax.experimental.pallas import tpu as pltpu


def _round_up(v, m):
    return ((v + m - 1) // m) * m


# ----------------------------------------------------------------------------
# Fused kernel: one grid step == one group of `g` molecules, BOTH graphs.
#   h      = ReLU(X @ W_mol_h)                     (one 2*g*a_pad-row matmul)
#   msg    = blockdiag(A) @ h                      (batched over molecule blocks)
#   atom_h = ReLU(msg @ W_mol_o)                   (one 2*g*a_pad-row matmul)
#   mol_X  = per-molecule row sums (padding rows are exactly zero, no bias)
#   drow   = (mol_X1 - mol_X2)^2 per lane ('l2')  or  mol_X1 * mol_X2 ('dot')
# ----------------------------------------------------------------------------
def _proto_net_kernel(x_ref, a_ref, wh_ref, wo_ref, ah_ref, drow_ref, *,
                      metric, g, a_pad):
    wh = wh_ref[...]                      # bf16 [F_pad, H_pad], resident across the grid
    wo = wo_ref[...]                      # bf16 [H_pad, H_pad]
    h_pad = wh.shape[1]

    x = x_ref[0]                          # bf16 [2*g*a_pad, F_pad] (graph1 rows then graph2 rows)
    adj = a_ref[0]                        # bf16 [2*g, a_pad, a_pad] per-molecule adjacency blocks

    # Layer 1: big-M matmul, f32 accumulation on the MXU.
    h = jnp.maximum(jnp.dot(x, wh, preferred_element_type=jnp.float32), 0.0)

    # Block-diagonal message passing as a batched matmul over the 2*g molecule blocks.
    h_blk = h.reshape(2 * g, a_pad, h_pad).astype(adj.dtype)
    msg = jnp.einsum('mij,mjd->mid', adj, h_blk,
                     preferred_element_type=jnp.float32)

    # Layer 2: big-M matmul again.
    msg2d = msg.reshape(2 * g * a_pad, h_pad).astype(wo.dtype)
    ah = jnp.maximum(jnp.dot(msg2d, wo, preferred_element_type=jnp.float32), 0.0)
    ah_ref[0] = ah.astype(ah_ref.dtype)   # bf16 writeback (halves HBM store traffic)

    # agg_func == 'sum' : padded atoms / padded molecules contribute exact zeros (no bias term).
    sums = jnp.sum(ah.reshape(2 * g, a_pad, h_pad), axis=1)   # f32 [2*g, H_pad] (XLU reduction)
    m1 = sums[:g]
    m2 = sums[g:]
    if metric == "l2":
        d = m1 - m2
        drow_ref[0] = d * d               # lane-dense partial sums; wrapper does the tiny sum
    else:  # 'dot'
        drow_ref[0] = m1 * m2


# ----------------------------------------------------------------------------
# ProtoNet forward (wrapper: vectorized pack of per-molecule blocks, fused call, unpack)
# ----------------------------------------------------------------------------
def proto_net_forward(x1, adj1, x2, adj2, scope, w_h, w_o,
                      distance_metric="l2", agg_func="sum", target_rows=256):
    """scope: static list of (start, length); identical for both graphs (only the diagonal
    mol_idx == mol_idx2 distances exist in the torch forward)."""
    assert agg_func == "sum"
    assert distance_metric in ("l2", "dot")
    # TODO(synk): 'wasserstein' (compute_ot / Sinkhorn) and nce_coef > 0 not implemented.

    f_in = x1.shape[1]
    hidden = w_o.shape[1]
    num_mols = len(scope)
    starts = np.asarray([st for st, _ in scope], dtype=np.int32)
    lens = np.asarray([le for _, le in scope], dtype=np.int32)
    max_len = int(lens.max())

    a_pad = _round_up(max(max_len, 16), 16)        # bf16 vreg is [16,128] -> 16-row alignment
    f_pad = _round_up(f_in, 128)                   # lane-aligned feature dim
    h_pad = _round_up(hidden, 128)                 # lane-aligned hidden dim
    g = max(1, target_rows // (2 * a_pad))         # molecules/step so 2*g*a_pad ~ 256 MXU rows
    mols_pad = _round_up(num_mols, g)
    num_groups = mols_pad // g
    m_rows = 2 * g * a_pad
    cdt = jnp.bfloat16                             # MXU input dtype (f32 accumulation in-kernel)

    # Static (numpy) gather indices: padded per-molecule atom slots.
    pos = np.arange(a_pad)
    valid_np = pos[None, :] < lens[:, None]                            # [num_mols, a_pad]
    idx_np = np.where(valid_np, starts[:, None] + pos[None, :], 0)
    idx = jnp.asarray(idx_np, dtype=jnp.int32)
    valid = jnp.asarray(valid_np)

    def pack(x, adj):
        xg = jnp.where(valid[:, :, None], x[idx], 0.0)                 # [M, a_pad, f_in]
        ag = adj[idx[:, :, None], idx[:, None, :]]                     # [M, a_pad, a_pad]
        ag = jnp.where(valid[:, :, None] & valid[:, None, :], ag, 0.0)
        xg = jnp.pad(xg, ((0, mols_pad - num_mols), (0, 0), (0, f_pad - f_in)))
        ag = jnp.pad(ag, ((0, mols_pad - num_mols), (0, 0), (0, 0)))
        xg = xg.reshape(num_groups, g * a_pad, f_pad).astype(cdt)
        ag = ag.reshape(num_groups, g, a_pad, a_pad).astype(cdt)
        return xg, ag

    x1g, a1g = pack(x1, adj1)
    x2g, a2g = pack(x2, adj2)
    x_packed = jnp.concatenate([x1g, x2g], axis=1)    # [groups, 2*g*a_pad, f_pad]
    a_packed = jnp.concatenate([a1g, a2g], axis=1)    # [groups, 2*g, a_pad, a_pad]
    wh_p = jnp.pad(w_h, ((0, f_pad - f_in), (0, h_pad - hidden))).astype(cdt)
    wo_p = jnp.pad(w_o, ((0, h_pad - hidden), (0, h_pad - hidden))).astype(cdt)

    kernel = functools.partial(_proto_net_kernel, metric=distance_metric, g=g, a_pad=a_pad)
    ah_out, drow = pl.pallas_call(
        kernel,
        out_shape=(
            jax.ShapeDtypeStruct((num_groups, m_rows, h_pad), jnp.bfloat16),  # atom_h (both graphs)
            jax.ShapeDtypeStruct((num_groups, g, h_pad), jnp.float32),        # dist lane-partials
        ),
        grid=(num_groups,),
        in_specs=[
            pl.BlockSpec((1, m_rows, f_pad), lambda gi: (gi, 0, 0)),
            pl.BlockSpec((1, 2 * g, a_pad, a_pad), lambda gi: (gi, 0, 0, 0)),
            pl.BlockSpec((f_pad, h_pad), lambda gi: (0, 0)),   # weights pinned (constant index)
            pl.BlockSpec((h_pad, h_pad), lambda gi: (0, 0)),
        ],
        out_specs=(
            pl.BlockSpec((1, m_rows, h_pad), lambda gi: (gi, 0, 0)),
            pl.BlockSpec((1, g, h_pad), lambda gi: (gi, 0, 0)),
        ),
        compiler_params=pltpu.CompilerParams(
            dimension_semantics=("parallel",)),                # groups independent -> megacore
    )(x_packed, a_packed, wh_p, wo_p)

    # Unpack with single vectorized gathers (no per-molecule device-op loops).
    ah = ah_out.reshape(num_groups, 2, g * a_pad, h_pad)
    ah1 = ah[:, 0].reshape(mols_pad * a_pad, h_pad)
    ah2 = ah[:, 1].reshape(mols_pad * a_pad, h_pad)
    flat_idx = jnp.asarray(
        np.concatenate([m * a_pad + np.arange(int(le)) for m, le in enumerate(lens)]
                       ).astype(np.int32))
    atom_h1 = ah1[flat_idx, :hidden].astype(jnp.float32)
    atom_h2 = ah2[flat_idx, :hidden].astype(jnp.float32)

    dists = jnp.sum(drow.reshape(mols_pad, h_pad), axis=-1)[:num_mols]   # [num_mols]
    preds = dists[-1:]   # torch: preds = cur_dist_list of the LAST molecule (length-1 vector)
    return {
        "preds": preds,
        "atom_h": (atom_h1, atom_h2),
        "nce_reg": None,          # nce_coef == 0 path
        "mol_pc_dist": dists,
    }


if __name__ == "__main__":
    key = jax.random.PRNGKey(0)
    k_x1, k_x2, k_a, k_wh, k_wo = jax.random.split(key, 5)

    # Small synthetic "molecular batch": 2 molecules x 8 atoms = 16 atoms, 32 in-feats, 32 hidden.
    num_mols, atoms_per_mol = 2, 8
    n_atoms = num_mols * atoms_per_mol
    f_in, hidden = 32, 32
    scope = [(i * atoms_per_mol, atoms_per_mol) for i in range(num_mols)]

    x1 = jax.random.normal(k_x1, (n_atoms, f_in), jnp.float32)
    x2 = jax.random.normal(k_x2, (n_atoms, f_in), jnp.float32)

    # Block-diagonal symmetric adjacency with self-loops (deterministic).
    bits = jax.random.bernoulli(k_a, 0.4, (n_atoms, n_atoms)).astype(jnp.float32)
    sym = jnp.maximum(bits, bits.T)
    block_mask = jnp.zeros((n_atoms, n_atoms), jnp.float32)
    for st, le in scope:
        block_mask = block_mask.at[st:st + le, st:st + le].set(1.0)
    adj = sym * block_mask + jnp.eye(n_atoms, dtype=jnp.float32)
    adj1 = adj
    adj2 = adj

    # GCN weights (W_mol_h, W_mol_o) — frozen in the torch module.
    w_h = jax.random.normal(k_wh, (f_in, hidden), jnp.float32) * 0.1
    w_o = jax.random.normal(k_wo, (hidden, hidden), jnp.float32) * 0.1

    out = proto_net_forward(x1, adj1, x2, adj2, scope, w_h, w_o)
    jax.block_until_ready(out["preds"])
    jax.block_until_ready(out["atom_h"])

    # Pure-JAX reference mirroring the kernel's bf16-input / f32-accumulate math.
    bf = jnp.bfloat16

    def ref_gcn(x, a):
        h = jnp.maximum(jnp.dot(x.astype(bf), w_h.astype(bf),
                                preferred_element_type=jnp.float32), 0.0)
        msg = jnp.dot(a.astype(bf), h.astype(bf), preferred_element_type=jnp.float32)
        return jnp.maximum(jnp.dot(msg.astype(bf), w_o.astype(bf),
                                   preferred_element_type=jnp.float32), 0.0)

    rh1, rh2 = ref_gcn(x1, adj1), ref_gcn(x2, adj2)
    ref_dists = []
    for st, le in scope:
        m1 = jnp.sum(rh1[st:st + le], axis=0)
        m2 = jnp.sum(rh2[st:st + le], axis=0)
        ref_dists.append(jnp.sum((m1 - m2) ** 2))
    ref_dists = jnp.stack(ref_dists)

    # atom_h is written back in bf16 -> slightly looser tolerance than f32.
    assert jnp.allclose(out["atom_h"][0], rh1, atol=2e-2, rtol=2e-2)
    assert jnp.allclose(out["atom_h"][1], rh2, atol=2e-2, rtol=2e-2)
    assert jnp.allclose(out["mol_pc_dist"], ref_dists, atol=5e-2, rtol=5e-2)
    assert jnp.allclose(out["preds"], ref_dists[-1:], atol=5e-2, rtol=5e-2)

    print("KERNEL_OK")
</pallas_src>

<mosaic_0001>
module attributes {stable_mosaic.version = 11 : i64} {
  func.func @_proto_net_kernel(%arg0: i32, %arg1: memref<1x256x128xbf16, #tpu.memory_space<vmem>>, %arg2: memref<1x16x16x16xbf16, #tpu.memory_space<vmem>>, %arg3: memref<128x128xbf16, #tpu.memory_space<vmem>>, %arg4: memref<128x128xbf16, #tpu.memory_space<vmem>>, %arg5: memref<1x256x128xbf16, #tpu.memory_space<vmem>>, %arg6: memref<1x8x128xf32, #tpu.memory_space<vmem>>) attributes {dimension_semantics = [#tpu.dimension_semantics<parallel>], iteration_bounds = array<i64: 1>, scalar_prefetch = 0 : i64, scratch_operands = 0 : i64, tpu.core_type = #tpu.core_type<tc>, window_params = [{transform_indices = @transform_0, window_bounds = array<i64: 1, 256, 128>}, {transform_indices = @transform_1, window_bounds = array<i64: 1, 16, 16, 16>}, {pipeline_mode = #tpu.pipeline_mode<synchronous>, transform_indices = @transform_2, window_bounds = array<i64: 128, 128>}, {pipeline_mode = #tpu.pipeline_mode<synchronous>, transform_indices = @transform_3, window_bounds = array<i64: 128, 128>}, {transform_indices = @transform_4, window_bounds = array<i64: 1, 256, 128>}, {transform_indices = @transform_5, window_bounds = array<i64: 1, 8, 128>}]} {
    %c0 = arith.constant 0 : index
    %c0_0 = arith.constant 0 : index
    %0 = vector.load %arg3[%c0, %c0_0] : memref<128x128xbf16, #tpu.memory_space<vmem>>, vector<128x128xbf16>
    %c0_1 = arith.constant 0 : index
    %c0_2 = arith.constant 0 : index
    %1 = vector.load %arg4[%c0_1, %c0_2] : memref<128x128xbf16, #tpu.memory_space<vmem>>, vector<128x128xbf16>
    %c0_3 = arith.constant 0 : index
    %c0_4 = arith.constant 0 : index
    %c0_5 = arith.constant 0 : index
    %2 = vector.load %arg1[%c0_3, %c0_4, %c0_5] : memref<1x256x128xbf16, #tpu.memory_space<vmem>>, vector<1x256x128xbf16>
    %3 = vector.shape_cast %2 : vector<1x256x128xbf16> to vector<256x128xbf16>
    %c0_6 = arith.constant 0 : index
    %c0_7 = arith.constant 0 : index
    %c0_8 = arith.constant 0 : index
    %c0_9 = arith.constant 0 : index
    %4 = vector.load %arg2[%c0_6, %c0_7, %c0_8, %c0_9] : memref<1x16x16x16xbf16, #tpu.memory_space<vmem>>, vector<1x16x16x16xbf16>
    %5 = vector.shape_cast %4 : vector<1x16x16x16xbf16> to vector<16x16x16xbf16>
    %cst = arith.constant dense<0.000000e+00> : vector<256x128xf32>
    %6 = tpu.matmul %3, %0, %cst {dimension_numbers = #tpu.dot_dimension_numbers<[1], [0], [0], [1], [0, 0, 1, 1], [], []>} : vector<256x128xbf16>, vector<128x128xbf16>, vector<256x128xf32> -> vector<256x128xf32>
    %cst_10 = arith.constant 0.000000e+00 : f32
    %7 = vector.broadcast %cst_10 : f32 to vector<256x128xf32>
    %8 = arith.maximumf %6, %7 : vector<256x128xf32>
    %9 = vector.shape_cast %8 : vector<256x128xf32> to vector<16x16x128xf32>
    %10 = arith.truncf %9 : vector<16x16x128xf32> to vector<16x16x128xbf16>
    "tpu.trace_start"() <{level = 10 : i32, message = "mij,mjd->mid"}> : () -> ()
    %cst_11 = arith.constant dense<0.000000e+00> : vector<16x16x128xf32>
    %11 = tpu.matmul %5, %10, %cst_11 {dimension_numbers = #tpu.dot_dimension_numbers<[2], [1], [1], [2], [0, 0, 0, 1, 1, 2], [0], [0]>} : vector<16x16x16xbf16>, vector<16x16x128xbf16>, vector<16x16x128xf32> -> vector<16x16x128xf32>
    "tpu.trace_stop"() : () -> ()
    %12 = vector.shape_cast %11 : vector<16x16x128xf32> to vector<256x128xf32>
    %13 = arith.truncf %12 : vector<256x128xf32> to vector<256x128xbf16>
    %cst_12 = arith.constant dense<0.000000e+00> : vector<256x128xf32>
    %14 = tpu.matmul %13, %1, %cst_12 {dimension_numbers = #tpu.dot_dimension_numbers<[1], [0], [0], [1], [0, 0, 1, 1], [], []>} : vector<256x128xbf16>, vector<128x128xbf16>, vector<256x128xf32> -> vector<256x128xf32>
    %cst_13 = arith.constant 0.000000e+00 : f32
    %15 = vector.broadcast %cst_13 : f32 to vector<256x128xf32>
    %16 = arith.maximumf %14, %15 : vector<256x128xf32>
    %17 = arith.truncf %16 : vector<256x128xf32> to vector<256x128xbf16>
    %c0_14 = arith.constant 0 : index
    %c0_15 = arith.constant 0 : index
    %c0_16 = arith.constant 0 : index
    %18 = vector.load %arg5[%c0_14, %c0_15, %c0_16] : memref<1x256x128xbf16, #tpu.memory_space<vmem>>, vector<1x256x128xbf16>
    %19 = vector.shape_cast %18 : vector<1x256x128xbf16> to vector<256x128xbf16>
    %20 = vector.shape_cast %17 : vector<256x128xbf16> to vector<1x256x128xbf16>
    tpu.vector_store %arg5[%c0_14, %c0_15, %c0_16], %20 {strides = array<i32>} : memref<1x256x128xbf16, #tpu.memory_space<vmem>>, vector<1x256x128xbf16>,
    %21 = vector.shape_cast %16 : vector<256x128xf32> to vector<16x16x128xf32>
    %cst_17 = arith.constant dense<0.000000e+00> : vector<16x128xf32>
    %22 = vector.multi_reduction <add>, %21, %cst_17 [1] : vector<16x16x128xf32> to vector<16x128xf32>
    %23 = vector.extract_strided_slice %22 {offsets = [0, 0], sizes = [8, 128], strides = [1, 1]} : vector<16x128xf32> to vector<8x128xf32>
    %24 = vector.extract_strided_slice %22 {offsets = [8, 0], sizes = [8, 128], strides = [1, 1]} : vector<16x128xf32> to vector<8x128xf32>
    %25 = arith.subf %23, %24 : vector<8x128xf32>
    %26 = arith.mulf %25, %25 : vector<8x128xf32>
    %c0_18 = arith.constant 0 : index
    %c0_19 = arith.constant 0 : index
    %c0_20 = arith.constant 0 : index
    %27 = vector.load %arg6[%c0_18, %c0_19, %c0_20] : memref<1x8x128xf32, #tpu.memory_space<vmem>>, vector<1x8x128xf32>
    %28 = vector.shape_cast %27 : vector<1x8x128xf32> to vector<8x128xf32>
    %29 = vector.shape_cast %26 : vector<8x128xf32> to vector<1x8x128xf32>
    tpu.vector_store %arg6[%c0_18, %c0_19, %c0_20], %29 {strides = array<i32>} : memref<1x8x128xf32, #tpu.memory_space<vmem>>, vector<1x8x128xf32>,
    return
  }
  func.func @transform_0(%arg0: i32) -> (i32, i32, i32) {
    %c0_i32 = arith.constant 0 : i32
    %c0_i32_0 = arith.constant 0 : i32
    %c0_i32_1 = arith.constant 0 : i32
    return %arg0, %c0_i32, %c0_i32_0 : i32, i32, i32
  }
  func.func @transform_1(%arg0: i32) -> (i32, i32, i32, i32) {
    %c0_i32 = arith.constant 0 : i32
    %c0_i32_0 = arith.constant 0 : i32
    %c0_i32_1 = arith.constant 0 : i32
    %c0_i32_2 = arith.constant 0 : i32
    return %arg0, %c0_i32, %c0_i32_0, %c0_i32_1 : i32, i32, i32, i32
  }
  func.func @transform_2(%arg0: i32) -> (i32, i32) {
    %c0_i32 = arith.constant 0 : i32
    %c0_i32_0 = arith.constant 0 : i32
    %c0_i32_1 = arith.constant 0 : i32
    return %c0_i32, %c0_i32_0 : i32, i32
  }
  func.func @transform_3(%arg0: i32) -> (i32, i32) {
    %c0_i32 = arith.constant 0 : i32
    %c0_i32_0 = arith.constant 0 : i32
    %c0_i32_1 = arith.constant 0 : i32
    return %c0_i32, %c0_i32_0 : i32, i32
  }
  func.func @transform_4(%arg0: i32) -> (i32, i32, i32) {
    %c0_i32 = arith.constant 0 : i32
    %c0_i32_0 = arith.constant 0 : i32
    %c0_i32_1 = arith.constant 0 : i32
    return %arg0, %c0_i32, %c0_i32_0 : i32, i32, i32
  }
  func.func @transform_5(%arg0: i32) -> (i32, i32, i32) {
    %c0_i32 = arith.constant 0 : i32
    %c0_i32_0 = arith.constant 0 : i32
    %c0_i32_1 = arith.constant 0 : i32
    return %arg0, %c0_i32, %c0_i32_0 : i32, i32, i32
  }
}

</mosaic_0001>

<llo_original>
// kernel: tpu_custom_call.1
$region0: #{tpu_custom_call.1}
  #allocation0 [shape = 'u32[]', space=smem, size = 0x4, offset = 0x4, fixed_abs, tag = 'smem constant byte address 0x4 - core index']
  #allocation1 [shape = 'u32[144,128]{1,0:T(1,128)}', space=vmem, size = 0x12000, scoped, tag = 'internal scratch']
  %s0 = inlined_call_operand.hbm [shape: bf16[1,256,128], index: 0, kind: input, shape index: {}]
  %s1 = inlined_call_operand.hbm [shape: bf16[1,16,16,16], index: 1, kind: input, shape index: {}]
  %s2 = inlined_call_operand.hbm [shape: bf16[128,128], index: 2, kind: input, shape index: {}]
  %s3 = inlined_call_operand.hbm [shape: bf16[128,128], index: 3, kind: input, shape index: {}]
  %s4 = inlined_call_operand.hbm [shape: bf16[1,256,128], index: 4, kind: output, shape index: {0}]
  %s5 = inlined_call_operand.hbm [shape: f32[1,8,128], index: 5, kind: output, shape index: {1}]
  %6 = xla_tuple %s4, %s5
  %s7 = sld [smem:[#allocation0]]
  $region50: #{tpu_custom_call.1} parent=0
    _
  %s9 = ssub.s32 1, %s7
  %s10 = scalar_select 0, %s9, %s7
  $region1: #{tpu_custom_call.1} parent=0
    #allocation2 [shape = 'u8[65536]{0}', space=vmem, size = 0x10000, scoped, tag = 'input window, operand 0, single buffered']
    #allocation3 [shape = 's32[1]{0}', space=sflag, size = 0x4, scoped, tag = 'scoped memory for tpu_custom_call.1']
    #allocation4 [shape = 's32[1]{0}', space=sflag, size = 0x4, scoped, tag = 'scoped memory for tpu_custom_call.1']
    #allocation5 [shape = 'u8[65536]{0}', space=vmem, size = 0x10000, scoped, tag = 'input window, operand 1, single buffered']
    #allocation6 [shape = 's32[1]{0}', space=sflag, size = 0x4, scoped, tag = 'scoped memory for tpu_custom_call.1']
    #allocation7 [shape = 'u8[32768]{0}', space=vmem, size = 0x8000, scoped, tag = 'input window, operand 2, single buffered']
    #allocation8 [shape = 'u8[32768]{0}', space=vmem, size = 0x8000, scoped, tag = 'input window, operand 3, single buffered']
    #allocation9 [shape = 's32[1]{0}', space=sflag, size = 0x4, scoped, tag = 'scoped memory for tpu_custom_call.1']
    #allocation10 [shape = 'u8[65536]{0}', space=vmem, size = 0x10000, scoped, tag = 'output window, operand 0, single buffered']
    #allocation11 [shape = 'u8[4096]{0}', space=vmem, size = 0x1000, scoped, tag = 'output window, operand 1, single buffered']
    #allocation12 [shape = 's32[1]{0}', space=sflag, size = 0x4, scoped, tag = 'scoped memory for tpu_custom_call.1']
    %11 = vsyncpa [#allocation3], 0
    %12 = vsyncpa [#allocation6], 0
    %13 = vsyncpa [#allocation9], 0
    %14 = vsyncpa [#allocation4], 0
    %15 = vsyncpa [#allocation12], 0
    // Predicated region
    $region2: #{tpu_custom_call.1} parent=1 // pred_check
      _
    $region3: #{tpu_custom_call.1} parent=1 // pred_check_branch
      %17 = sbr.rel (0) target = $region5
    $region4: #{tpu_custom_call.1} parent=1 // pred_region
      %s19 = ssub.s32 2048, 2048
      %20 = vsyncadd [#allocation3], %s19
      %s21 = sshll.u32 [#allocation2], 4
      %s22 = int_to_ptr.vmem [resolvable:$true] %s21
      %27 = dma.hbm_to_vmem [thread:$0]  %s0, 2048, %s22, [#allocation3], 64, 64, 4
    $region5: #{tpu_custom_call.1} parent=1 // pred_fallthru
      _
    // Predicated region
    $region6: #{tpu_custom_call.1} parent=1 // pred_check
      _
    $region7: #{tpu_custom_call.1} parent=1 // pred_check_branch
      %29 = sbr.rel (0) target = $region9
    $region8: #{tpu_custom_call.1} parent=1 // pred_region
      %s31 = ssub.s32 2048, 2048
      %32 = vsyncadd [#allocation6], %s31
      %s33 = sshll.u32 [#allocation5], 4
      %s34 = int_to_ptr.vmem [resolvable:$true] %s33
      %39 = dma.hbm_to_vmem [thread:$0]  %s1, 2048, %s34, [#allocation6], 64, 64, 4
    $region9: #{tpu_custom_call.1} parent=1 // pred_fallthru
      _
    // Predicated region
    $region10: #{tpu_custom_call.1} parent=1 // pred_check
      _
    $region11: #{tpu_custom_call.1} parent=1 // pred_check_branch
      %41 = sbr.rel (0) target = $region13
    $region12: #{tpu_custom_call.1} parent=1 // pred_region
      %s43 = ssub.s32 1024, 1024
      %44 = vsyncadd [#allocation6], %s43
      %s45 = sshll.u32 [#allocation7], 4
      %s46 = int_to_ptr.vmem [resolvable:$true] %s45
      %51 = dma.hbm_to_vmem [thread:$0]  %s2, 1024, %s46, [#allocation6], 64, 64, 4
    $region13: #{tpu_custom_call.1} parent=1 // pred_fallthru
      _
    // Predicated region
    $region14: #{tpu_custom_call.1} parent=1 // pred_check
      _
    $region15: #{tpu_custom_call.1} parent=1 // pred_check_branch
      %53 = sbr.rel (0) target = $region17
    $region16: #{tpu_custom_call.1} parent=1 // pred_region
      %s55 = ssub.s32 1024, 1024
      %56 = vsyncadd [#allocation9], %s55
      %s57 = sshll.u32 [#allocation8], 4
      %s58 = int_to_ptr.vmem [resolvable:$true] %s57
      %63 = dma.hbm_to_vmem [thread:$0]  %s3, 1024, %s58, [#allocation9], 64, 64, 4
    $region17: #{tpu_custom_call.1} parent=1 // pred_fallthru
      _
    // Predicated region
    $region18: #{tpu_custom_call.1} parent=1 // pred_check
      _
    $region19: #{tpu_custom_call.1} parent=1 // pred_check_branch
      %65 = sbr.rel (0) target = $region21
    $region20: #{tpu_custom_call.1} parent=1 // pred_region
      %66 = dma.done [#allocation3], 2048
    $region21: #{tpu_custom_call.1} parent=1 // pred_fallthru
      _
    // Predicated region
    $region22: #{tpu_custom_call.1} parent=1 // pred_check
      _
    $region23: #{tpu_custom_call.1} parent=1 // pred_check_branch
      %68 = sbr.rel (0) target = $region25
    $region24: #{tpu_custom_call.1} parent=1 // pred_region
      %69 = dma.done [#allocation6], 2048
    $region25: #{tpu_custom_call.1} parent=1 // pred_fallthru
      _
    // Predicated region
    $region26: #{tpu_custom_call.1} parent=1 // pred_check
      _
    $region27: #{tpu_custom_call.1} parent=1 // pred_check_branch
      %71 = sbr.rel (0) target = $region29
    $region28: #{tpu_custom_call.1} parent=1 // pred_region
      %72 = dma.done [#allocation6], 1024
    $region29: #{tpu_custom_call.1} parent=1 // pred_fallthru
      _
    // Predicated region
    $region30: #{tpu_custom_call.1} parent=1 // pred_check
      _
    $region31: #{tpu_custom_call.1} parent=1 // pred_check_branch
      %74 = sbr.rel (0) target = $region33
    $region32: #{tpu_custom_call.1} parent=1 // pred_region
      %75 = dma.done [#allocation9], 1024
    $region33: #{tpu_custom_call.1} parent=1 // pred_fallthru
      _
    %v77 = vld [vmem:[#allocation7] sm:$0xf]
    %v78 = vld [vmem:[#allocation7 + $0x4] sm:$0xf]
    %v79 = vld [vmem:[#allocation7 + $0x8] sm:$0xf]
    %v80 = vld [vmem:[#allocation7 + $0xc] sm:$0xf]
    %v81 = vld [vmem:[#allocation7 + $0x10] sm:$0xf]
    %v82 = vld [vmem:[#allocation7 + $0x14] sm:$0xf]
    %v83 = vld [vmem:[#allocation7 + $0x18] sm:$0xf]
    %v84 = vld [vmem:[#allocation7 + $0x1c] sm:$0xf]
    %v85 = vld [vmem:[#allocation7 + $0x20] sm:$0xf]
    %v86 = vld [vmem:[#allocation7 + $0x24] sm:$0xf]
    %v87 = vld [vmem:[#allocation7 + $0x28] sm:$0xf]
    %v88 = vld [vmem:[#allocation7 + $0x2c] sm:$0xf]
    %v89 = vld [vmem:[#allocation7 + $0x30] sm:$0xf]
    %v90 = vld [vmem:[#allocation7 + $0x34] sm:$0xf]
    %v91 = vld [vmem:[#allocation7 + $0x38] sm:$0xf]
    %v92 = vld [vmem:[#allocation7 + $0x3c] sm:$0xf]
    %v93 = vld [vmem:[#allocation8] sm:$0xf]
    %v94 = vld [vmem:[#allocation8 + $0x4] sm:$0xf]
    %v95 = vld [vmem:[#allocation8 + $0x8] sm:$0xf]
    %v96 = vld [vmem:[#allocation8 + $0xc] sm:$0xf]
    %v97 = vld [vmem:[#allocation8 + $0x10] sm:$0xf]
    %v98 = vld [vmem:[#allocation8 + $0x14] sm:$0xf]
    %v99 = vld [vmem:[#allocation8 + $0x18] sm:$0xf]
    %v100 = vld [vmem:[#allocation8 + $0x1c] sm:$0xf]
    %v101 = vld [vmem:[#allocation8 + $0x20] sm:$0xf]
    %v102 = vld [vmem:[#allocation8 + $0x24] sm:$0xf]
    %v103 = vld [vmem:[#allocation8 + $0x28] sm:$0xf]
    %v104 = vld [vmem:[#allocation8 + $0x2c] sm:$0xf]
    %v105 = vld [vmem:[#allocation8 + $0x30] sm:$0xf]
    %v106 = vld [vmem:[#allocation8 + $0x34] sm:$0xf]
    %v107 = vld [vmem:[#allocation8 + $0x38] sm:$0xf]
    %v108 = vld [vmem:[#allocation8 + $0x3c] sm:$0xf]
    %v109 = vld [vmem:[#allocation2] sm:$0xf]
    %v110 = vld [vmem:[#allocation2 + $0x4] sm:$0xf]
    %v111 = vld [vmem:[#allocation2 + $0x8] sm:$0xf]
    %v112 = vld [vmem:[#allocation2 + $0xc] sm:$0xf]
    %v113 = vld [vmem:[#allocation2 + $0x10] sm:$0xf]
    %v114 = vld [vmem:[#allocation2 + $0x14] sm:$0xf]
    %v115 = vld [vmem:[#allocation2 + $0x18] sm:$0xf]
    %v116 = vld [vmem:[#allocation2 + $0x1c] sm:$0xf]
    %v117 = vld [vmem:[#allocation2 + $0x20] sm:$0xf]
    %v118 = vld [vmem:[#allocation2 + $0x24] sm:$0xf]
    %v119 = vld [vmem:[#allocation2 + $0x28] sm:$0xf]
    %v120 = vld [vmem:[#allocation2 + $0x2c] sm:$0xf]
    %v121 = vld [vmem:[#allocation2 + $0x30] sm:$0xf]
    %v122 = vld [vmem:[#allocation2 + $0x34] sm:$0xf]
    %v123 = vld [vmem:[#allocation2 + $0x38] sm:$0xf]
    %v124 = vld [vmem:[#allocation2 + $0x3c] sm:$0xf]
    %v125 = vld [vmem:[#allocation2 + $0x40] sm:$0xf]
    %v126 = vld [vmem:[#allocation2 + $0x44] sm:$0xf]
    %v127 = vld [vmem:[#allocation2 + $0x48] sm:$0xf]
    %v128 = vld [vmem:[#allocation2 + $0x4c] sm:$0xf]
    %v129 = vld [vmem:[#allocation2 + $0x50] sm:$0xf]
    %v130 = vld [vmem:[#allocation2 + $0x54] sm:$0xf]
    %v131 = vld [vmem:[#allocation2 + $0x58] sm:$0xf]
    %v132 = vld [vmem:[#allocation2 + $0x5c] sm:$0xf]
    %v133 = vld [vmem:[#allocation2 + $0x60] sm:$0xf]
    %v134 = vld [vmem:[#allocation2 + $0x64] sm:$0xf]
    %v135 = vld [vmem:[#allocation2 + $0x68] sm:$0xf]
    %v136 = vld [vmem:[#allocation2 + $0x6c] sm:$0xf]
    %v137 = vld [vmem:[#allocation2 + $0x70] sm:$0xf]
    %v138 = vld [vmem:[#allocation2 + $0x74] sm:$0xf]
    %v139 = vld [vmem:[#allocation2 + $0x78] sm:$0xf]
    %v140 = vld [vmem:[#allocation2 + $0x7c] sm:$0xf]
    %v141 = vld [vmem:[#allocation5] sm:$0xf]
    %v142 = vld [vmem:[#allocation5 + $0x4] sm:$0xf]
    %v143 = vld [vmem:[#allocation5 + $0x8] sm:$0xf]
    %v144 = vld [vmem:[#allocation5 + $0xc] sm:$0xf]
    %v145 = vld [vmem:[#allocation5 + $0x10] sm:$0xf]
    %v146 = vld [vmem:[#allocation5 + $0x14] sm:$0xf]
    %v147 = vld [vmem:[#allocation5 + $0x18] sm:$0xf]
    %v148 = vld [vmem:[#allocation5 + $0x1c] sm:$0xf]
    %v149 = vld [vmem:[#allocation5 + $0x20] sm:$0xf]
    %v150 = vld [vmem:[#allocation5 + $0x24] sm:$0xf]
    %v151 = vld [vmem:[#allocation5 + $0x28] sm:$0xf]
    %v152 = vld [vmem:[#allocation5 + $0x2c] sm:$0xf]
    %v153 = vld [vmem:[#allocation5 + $0x30] sm:$0xf]
    %v154 = vld [vmem:[#allocation5 + $0x34] sm:$0xf]
    %v155 = vld [vmem:[#allocation5 + $0x38] sm:$0xf]
    %v156 = vld [vmem:[#allocation5 + $0x3c] sm:$0xf]
    %v157 = vld [vmem:[#allocation5 + $0x40] sm:$0xf]
    %v158 = vld [vmem:[#allocation5 + $0x44] sm:$0xf]
    %v159 = vld [vmem:[#allocation5 + $0x48] sm:$0xf]
    %v160 = vld [vmem:[#allocation5 + $0x4c] sm:$0xf]
    %v161 = vld [vmem:[#allocation5 + $0x50] sm:$0xf]
    %v162 = vld [vmem:[#allocation5 + $0x54] sm:$0xf]
    %v163 = vld [vmem:[#allocation5 + $0x58] sm:$0xf]
    %v164 = vld [vmem:[#allocation5 + $0x5c] sm:$0xf]
    %v165 = vld [vmem:[#allocation5 + $0x60] sm:$0xf]
    %v166 = vld [vmem:[#allocation5 + $0x64] sm:$0xf]
    %v167 = vld [vmem:[#allocation5 + $0x68] sm:$0xf]
    %v168 = vld [vmem:[#allocation5 + $0x6c] sm:$0xf]
    %v169 = vld [vmem:[#allocation5 + $0x70] sm:$0xf]
    %v170 = vld [vmem:[#allocation5 + $0x74] sm:$0xf]
    %v171 = vld [vmem:[#allocation5 + $0x78] sm:$0xf]
    %v172 = vld [vmem:[#allocation5 + $0x7c] sm:$0xf]
    %v205 = vunpack.c.l.b16 %v109
    %v206 = vunpack.c.l.b16 %v110
    %v207 = vunpack.c.l.b16 %v111
    %v208 = vunpack.c.l.b16 %v112
    %v209 = vunpack.c.l.b16 %v113
    %v210 = vunpack.c.l.b16 %v114
    %v211 = vunpack.c.l.b16 %v115
    %v212 = vunpack.c.l.b16 %v116
    %v213 = vunpack.c.l.b16 %v117
    %v214 = vunpack.c.l.b16 %v118
    %v215 = vunpack.c.l.b16 %v119
    %v216 = vunpack.c.l.b16 %v120
    %v217 = vunpack.c.l.b16 %v121
    %v218 = vunpack.c.l.b16 %v122
    %v219 = vunpack.c.l.b16 %v123
    %v220 = vunpack.c.l.b16 %v124
    %v221 = vunpack.c.l.b16 %v125
    %v222 = vunpack.c.l.b16 %v126
    %v223 = vunpack.c.l.b16 %v127
    %v224 = vunpack.c.l.b16 %v128
    %v225 = vunpack.c.l.b16 %v129
    %v226 = vunpack.c.l.b16 %v130
    %v227 = vunpack.c.l.b16 %v131
    %v228 = vunpack.c.l.b16 %v132
    %v229 = vunpack.c.l.b16 %v133
    %v230 = vunpack.c.l.b16 %v134
    %v231 = vunpack.c.l.b16 %v135
    %v232 = vunpack.c.l.b16 %v136
    %v233 = vunpack.c.l.b16 %v137
    %v234 = vunpack.c.l.b16 %v138
    %v235 = vunpack.c.l.b16 %v139
    %v236 = vunpack.c.l.b16 %v140
    %v237 = vpack.c.b16 %v206, %v205
    %v238 = vpack.c.b16 %v208, %v207
    %v239 = vpack.c.b16 %v210, %v209
    %v240 = vpack.c.b16 %v212, %v211
    %v241 = vpack.c.b16 %v214, %v213
    %v242 = vpack.c.b16 %v216, %v215
    %v243 = vpack.c.b16 %v218, %v217
    %v244 = vpack.c.b16 %v220, %v219
    %v245 = vpack.c.b16 %v222, %v221
    %v246 = vpack.c.b16 %v224, %v223
    %v247 = vpack.c.b16 %v226, %v225
    %v248 = vpack.c.b16 %v228, %v227
    %v249 = vpack.c.b16 %v230, %v229
    %v250 = vpack.c.b16 %v232, %v231
    %v251 = vpack.c.b16 %v234, %v233
    %v252 = vpack.c.b16 %v236, %v235
    %v285 = vunpack.c.l.b16 %v77
    %v286 = vunpack.c.l.b16 %v78
    %v287 = vunpack.c.l.b16 %v79
    %v288 = vunpack.c.l.b16 %v80
    %v289 = vunpack.c.l.b16 %v81
    %v290 = vunpack.c.l.b16 %v82
    %v291 = vunpack.c.l.b16 %v83
    %v292 = vunpack.c.l.b16 %v84
    %v293 = vunpack.c.l.b16 %v85
    %v294 = vunpack.c.l.b16 %v86
    %v295 = vunpack.c.l.b16 %v87
    %v296 = vunpack.c.l.b16 %v88
    %v297 = vunpack.c.l.b16 %v89
    %v298 = vunpack.c.l.b16 %v90
    %v299 = vunpack.c.l.b16 %v91
    %v300 = vunpack.c.l.b16 %v92
    %v301 = vpack.c.b16 %v286, %v285
    %v302 = vpack.c.b16 %v288, %v287
    %v303 = vpack.c.b16 %v290, %v289
    %v304 = vpack.c.b16 %v292, %v291
    %v305 = vpack.c.b16 %v294, %v293
    %v306 = vpack.c.b16 %v296, %v295
    %v307 = vpack.c.b16 %v298, %v297
    %v308 = vpack.c.b16 %v300, %v299
    %317 = vmatprep.subr.bf16.mxu0 0
    %318 = vmatpush1.bf16.msra.mxu0 %v301
    %319 = vmatprep.subr.bf16.mxu0 0
    %320 = vmatpush1.bf16.msra.mxu0 %v302
    %321 = vmatprep.subr.bf16.mxu0 0
    %322 = vmatpush1.bf16.msra.mxu0 %v303
    %323 = vmatprep.subr.bf16.mxu0 0
    %324 = vmatpush1.bf16.msra.mxu0 %v304
    %325 = vmatprep.subr.bf16.mxu0 0
    %326 = vmatpush1.bf16.msra.mxu0 %v305
    %327 = vmatprep.subr.bf16.mxu0 0
    %328 = vmatpush1.bf16.msra.mxu0 %v306
    %329 = vmatprep.subr.bf16.mxu0 0
    %330 = vmatpush1.bf16.msra.mxu0 %v307
    %331 = vmatprep.subr.bf16.mxu0 0
    %332 = vmatpush1.bf16.msra.mxu0 %v308
    %333 = vmatprep.subr.bf16.mxu0 0
    %334 = vmatpush1.bf16.msra.mxu0 0
    %335 = vmatprep.subr.bf16.mxu0 0
    %336 = vmatpush1.bf16.msra.mxu0 0
    %337 = vmatprep.subr.bf16.mxu0 0
    %338 = vmatpush1.bf16.msra.mxu0 0
    %339 = vmatprep.subr.bf16.mxu0 0
    %340 = vmatpush1.bf16.msra.mxu0 0
    %341 = vmatprep.subr.bf16.mxu0 0
    %342 = vmatpush1.bf16.msra.mxu0 0
    %343 = vmatprep.subr.bf16.mxu0 0
    %344 = vmatpush1.bf16.msra.mxu0 0
    %345 = vmatprep.subr.bf16.mxu0 0
    %346 = vmatpush1.bf16.msra.mxu0 0
    %347 = vmatprep.subr.bf16.mxu0 0
    %348 = vmatpush1.bf16.msra.mxu0 0
    %349 = vmatprep.mubr.bf16.mxu0 0
    %350 = vmatmul.mubr.bf16.gmra.mrb[0].mxu0 %v237
    %v351 = vpop.f32.mrb[0].mxu0
    %v352 = vadd.f32 0.0, %v351
    %v353 = vpop.f32.mrb[0].mxu0
    %v354 = vpop.f32.mrb[0].mxu0
    %v355 = vadd.f32 0.0, %v354
    %v356 = vpop.f32.mrb[0].mxu0
    %357 = vmatprep.mubr.bf16.mxu0 0
    %358 = vmatmul.mubr.bf16.gmra.mrb[0].mxu0 %v238
    %v359 = vpop.f32.mrb[0].mxu0
    %v360 = vadd.f32 0.0, %v359
    %v361 = vpop.f32.mrb[0].mxu0
    %v362 = vpop.f32.mrb[0].mxu0
    %v363 = vadd.f32 0.0, %v362
    %v364 = vpop.f32.mrb[0].mxu0
    %365 = vmatprep.mubr.bf16.mxu0 0
    %366 = vmatmul.mubr.bf16.gmra.mrb[0].mxu0 %v239
    %v367 = vpop.f32.mrb[0].mxu0
    %v368 = vadd.f32 0.0, %v367
    %v369 = vpop.f32.mrb[0].mxu0
    %v370 = vpop.f32.mrb[0].mxu0
    %v371 = vadd.f32 0.0, %v370
    %v372 = vpop.f32.mrb[0].mxu0
    %373 = vmatprep.mubr.bf16.mxu0 0
    %374 = vmatmul.mubr.bf16.gmra.mrb[0].mxu0 %v240
    %v375 = vpop.f32.mrb[0].mxu0
    %v376 = vadd.f32 0.0, %v375
    %v377 = vpop.f32.mrb[0].mxu0
    %v378 = vpop.f32.mrb[0].mxu0
    %v379 = vadd.f32 0.0, %v378
    %v380 = vpop.f32.mrb[0].mxu0
    %381 = vmatprep.mubr.bf16.mxu0 0
    %382 = vmatmul.mubr.bf16.gmra.mrb[0].mxu0 %v241
    %v383 = vpop.f32.mrb[0].mxu0
    %v384 = vadd.f32 0.0, %v383
    %v385 = vpop.f32.mrb[0].mxu0
    %v386 = vpop.f32.mrb[0].mxu0
    %v387 = vadd.f32 0.0, %v386
    %v388 = vpop.f32.mrb[0].mxu0
    %389 = vmatprep.mubr.bf16.mxu0 0
    %390 = vmatmul.mubr.bf16.gmra.mrb[0].mxu0 %v242
    %v391 = vpop.f32.mrb[0].mxu0
    %v392 = vadd.f32 0.0, %v391
    %v393 = vpop.f32.mrb[0].mxu0
    %v394 = vpop.f32.mrb[0].mxu0
    %v395 = vadd.f32 0.0, %v394
    %v396 = vpop.f32.mrb[0].mxu0
    %397 = vmatprep.mubr.bf16.mxu0 0
    %398 = vmatmul.mubr.bf16.gmra.mrb[0].mxu0 %v243
    %v399 = vpop.f32.mrb[0].mxu0
    %v400 = vadd.f32 0.0, %v399
    %v401 = vpop.f32.mrb[0].mxu0
    %v402 = vpop.f32.mrb[0].mxu0
    %v403 = vadd.f32 0.0, %v402
    %v404 = vpop.f32.mrb[0].mxu0
    %405 = vmatprep.mubr.bf16.mxu0 0
    %406 = vmatmul.mubr.bf16.gmra.mrb[0].mxu0 %v244
    %v407 = vpop.f32.mrb[0].mxu0
    %v408 = vadd.f32 0.0, %v407
    %v409 = vpop.f32.mrb[0].mxu0
    %v410 = vpop.f32.mrb[0].mxu0
    %v411 = vadd.f32 0.0, %v410
    %v412 = vpop.f32.mrb[0].mxu0
    %413 = vmatprep.mubr.bf16.mxu0 0
    %414 = vmatmul.mubr.bf16.gmra.mrb[0].mxu0 %v245
    %v415 = vpop.f32.mrb[0].mxu0
    %v416 = vadd.f32 0.0, %v415
    %v417 = vpop.f32.mrb[0].mxu0
    %v418 = vpop.f32.mrb[0].mxu0
    %v419 = vadd.f32 0.0, %v418
    %v420 = vpop.f32.mrb[0].mxu0
    %421 = vmatprep.mubr.bf16.mxu0 0
    %422 = vmatmul.mubr.bf16.gmra.mrb[0].mxu0 %v246
    %v423 = vpop.f32.mrb[0].mxu0
    %v424 = vadd.f32 0.0, %v423
    %v425 = vpop.f32.mrb[0].mxu0
    %v426 = vpop.f32.mrb[0].mxu0
    %v427 = vadd.f32 0.0, %v426
    %v428 = vpop.f32.mrb[0].mxu0
    %429 = vmatprep.mubr.bf16.mxu0 0
    %430 = vmatmul.mubr.bf16.gmra.mrb[0].mxu0 %v247
    %v431 = vpop.f32.mrb[0].mxu0
    %v432 = vadd.f32 0.0, %v431
    %v433 = vpop.f32.mrb[0].mxu0
    %v434 = vpop.f32.mrb[0].mxu0
    %v435 = vadd.f32 0.0, %v434
    %v436 = vpop.f32.mrb[0].mxu0
    %437 = vmatprep.mubr.bf16.mxu0 0
    %438 = vmatmul.mubr.bf16.gmra.mrb[0].mxu0 %v248
    %v439 = vpop.f32.mrb[0].mxu0
    %v440 = vadd.f32 0.0, %v439
    %v441 = vpop.f32.mrb[0].mxu0
    %v442 = vpop.f32.mrb[0].mxu0
    %v443 = vadd.f32 0.0, %v442
    %v444 = vpop.f32.mrb[0].mxu0
    %445 = vmatprep.mubr.bf16.mxu0 0
    %446 = vmatmul.mubr.bf16.gmra.mrb[0].mxu0 %v249
    %v447 = vpop.f32.mrb[0].mxu0
    %v448 = vadd.f32 0.0, %v447
    %v449 = vpop.f32.mrb[0].mxu0
    %v450 = vpop.f32.mrb[0].mxu0
    %v451 = vadd.f32 0.0, %v450
    %v452 = vpop.f32.mrb[0].mxu0
    %453 = vmatprep.mubr.bf16.mxu0 0
    %454 = vmatmul.mubr.bf16.gmra.mrb[0].mxu0 %v250
    %v455 = vpop.f32.mrb[0].mxu0
    %v456 = vadd.f32 0.0, %v455
    %v457 = vpop.f32.mrb[0].mxu0
    %v458 = vpop.f32.mrb[0].mxu0
    %v459 = vadd.f32 0.0, %v458
    %v460 = vpop.f32.mrb[0].mxu0
    %461 = vmatprep.mubr.bf16.mxu0 0
    %462 = vmatmul.mubr.bf16.gmra.mrb[0].mxu0 %v251
    %v463 = vpop.f32.mrb[0].mxu0
    %v464 = vadd.f32 0.0, %v463
    %v465 = vpop.f32.mrb[0].mxu0
    %v466 = vpop.f32.mrb[0].mxu0
    %v467 = vadd.f32 0.0, %v466
    %v468 = vpop.f32.mrb[0].mxu0
    %469 = vmatprep.mubr.bf16.mxu0 0
    %470 = vmatmul.mubr.bf16.gmra.mrb[0].mxu0 %v252
    %v471 = vpop.f32.mrb[0].mxu0
    %v472 = vadd.f32 0.0, %v471
    %v473 = vpop.f32.mrb[0].mxu0
    %v474 = vpop.f32.mrb[0].mxu0
    %v475 = vadd.f32 0.0, %v474
    %v476 = vpop.f32.mrb[0].mxu0
    %477 = vdwg.mxu0
    %v478 = vmax.f32 %v352, 0.0
    %v479 = vmax.f32 %v355, 0.0
    %v480 = vmax.f32 %v360, 0.0
    %v481 = vmax.f32 %v363, 0.0
    %v482 = vmax.f32 %v368, 0.0
    %v483 = vmax.f32 %v371, 0.0
    %v484 = vmax.f32 %v376, 0.0
    %v485 = vmax.f32 %v379, 0.0
    %v486 = vmax.f32 %v384, 0.0
    %v487 = vmax.f32 %v387, 0.0
    %v488 = vmax.f32 %v392, 0.0
    %v489 = vmax.f32 %v395, 0.0
    %v490 = vmax.f32 %v400, 0.0
    %v491 = vmax.f32 %v403, 0.0
    %v492 = vmax.f32 %v408, 0.0
    %v493 = vmax.f32 %v411, 0.0
    %v494 = vmax.f32 %v416, 0.0
    %v495 = vmax.f32 %v419, 0.0
    %v496 = vmax.f32 %v424, 0.0
    %v497 = vmax.f32 %v427, 0.0
    %v498 = vmax.f32 %v432, 0.0
    %v499 = vmax.f32 %v435, 0.0
    %v500 = vmax.f32 %v440, 0.0
    %v501 = vmax.f32 %v443, 0.0
    %v502 = vmax.f32 %v448, 0.0
    %v503 = vmax.f32 %v451, 0.0
    %v504 = vmax.f32 %v456, 0.0
    %v505 = vmax.f32 %v459, 0.0
    %v506 = vmax.f32 %v464, 0.0
    %v507 = vmax.f32 %v467, 0.0
    %v508 = vmax.f32 %v472, 0.0
    %v509 = vmax.f32 %v475, 0.0
    %v510 = vpack.c.bf16 %v479, %v478
    %v511 = vpack.c.bf16 %v481, %v480
    %v512 = vpack.c.bf16 %v483, %v482
    %v513 = vpack.c.bf16 %v485, %v484
    %v514 = vpack.c.bf16 %v487, %v486
    %v515 = vpack.c.bf16 %v489, %v488
    %v516 = vpack.c.bf16 %v491, %v490
    %v517 = vpack.c.bf16 %v493, %v492
    %v518 = vpack.c.bf16 %v495, %v494
    %v519 = vpack.c.bf16 %v497, %v496
    %v520 = vpack.c.bf16 %v499, %v498
    %v521 = vpack.c.bf16 %v501, %v500
    %v522 = vpack.c.bf16 %v503, %v502
    %v523 = vpack.c.bf16 %v505, %v504
    %v524 = vpack.c.bf16 %v507, %v506
    %v525 = vpack.c.bf16 %v509, %v508
    %v528 = vunpack.c.l.b16 %v141
    %v529 = vunpack.c.l.b16 %v142
    %v530 = vpack.c.b16 %v529, %v528
    %vm531 = vcmask 130048
    %v533 = vsel %vm531, %v530, 0
    %535 = vmatprep.subr.bf16.mxu0 0
    %536 = vmatpush1.bf16.msra.mxu0 %v510
    %537 = vmatprep.subr.bf16.mxu0 0
    %538 = vmatpush1.bf16.msra.mxu0 0
    %539 = vmatprep.subr.bf16.mxu0 0
    %540 = vmatpush1.bf16.msra.mxu0 0
    %541 = vmatprep.subr.bf16.mxu0 0
    %542 = vmatpush1.bf16.msra.mxu0 0
    %543 = vmatprep.subr.bf16.mxu0 0
    %544 = vmatpush1.bf16.msra.mxu0 0
    %545 = vmatprep.subr.bf16.mxu0 0
    %546 = vmatpush1.bf16.msra.mxu0 0
    %547 = vmatprep.subr.bf16.mxu0 0
    %548 = vmatpush1.bf16.msra.mxu0 0
    %549 = vmatprep.subr.bf16.mxu0 0
    %550 = vmatpush1.bf16.msra.mxu0 0
    %551 = vmatprep.subr.bf16.mxu0 0
    %552 = vmatpush1.bf16.msra.mxu0 0
    %553 = vmatprep.subr.bf16.mxu0 0
    %554 = vmatpush1.bf16.msra.mxu0 0
    %555 = vmatprep.subr.bf16.mxu0 0
    %556 = vmatpush1.bf16.msra.mxu0 0
    %557 = vmatprep.subr.bf16.mxu0 0
    %558 = vmatpush1.bf16.msra.mxu0 0
    %559 = vmatprep.subr.bf16.mxu0 0
    %560 = vmatpush1.bf16.msra.mxu0 0
    %561 = vmatprep.subr.bf16.mxu0 0
    %562 = vmatpush1.bf16.msra.mxu0 0
    %563 = vmatprep.subr.bf16.mxu0 0
    %564 = vmatpush1.bf16.msra.mxu0 0
    %565 = vmatprep.subr.bf16.mxu0 0
    %566 = vmatpush1.bf16.msra.mxu0 0
    %567 = vmatprep.mubr.bf16.mxu0 0
    %568 = vmatmul.mubr.bf16.gmra.mrb[0].mxu0 %v533
    %v569 = vpop.f32.mrb[0].mxu0
    %v570 = vadd.f32 0.0, %v569
    %v571 = vpop.f32.mrb[0].mxu0
    %v572 = vpop.f32.mrb[0].mxu0
    %v573 = vadd.f32 0.0, %v572
    %v574 = vpop.f32.mrb[0].mxu0
    %575 = vdwg.mxu0
    %v578 = vunpack.c.l.b16 %v143
    %v579 = vunpack.c.l.b16 %v144
    %v580 = vpack.c.b16 %v579, %v578
    %v582 = vsel %vm531, %v580, 0
    %584 = vmatprep.subr.bf16.mxu0 0
    %585 = vmatpush1.bf16.msra.mxu0 %v511
    %586 = vmatprep.subr.bf16.mxu0 0
    %587 = vmatpush1.bf16.msra.mxu0 0
    %588 = vmatprep.subr.bf16.mxu0 0
    %589 = vmatpush1.bf16.msra.mxu0 0
    %590 = vmatprep.subr.bf16.mxu0 0
    %591 = vmatpush1.bf16.msra.mxu0 0
    %592 = vmatprep.subr.bf16.mxu0 0
    %593 = vmatpush1.bf16.msra.mxu0 0
    %594 = vmatprep.subr.bf16.mxu0 0
    %595 = vmatpush1.bf16.msra.mxu0 0
    %596 = vmatprep.subr.bf16.mxu0 0
    %597 = vmatpush1.bf16.msra.mxu0 0
    %598 = vmatprep.subr.bf16.mxu0 0
    %599 = vmatpush1.bf16.msra.mxu0 0
    %600 = vmatprep.subr.bf16.mxu0 0
    %601 = vmatpush1.bf16.msra.mxu0 0
    %602 = vmatprep.subr.bf16.mxu0 0
    %603 = vmatpush1.bf16.msra.mxu0 0
    %604 = vmatprep.subr.bf16.mxu0 0
    %605 = vmatpush1.bf16.msra.mxu0 0
    %606 = vmatprep.subr.bf16.mxu0 0
    %607 = vmatpush1.bf16.msra.mxu0 0
    %608 = vmatprep.subr.bf16.mxu0 0
    %609 = vmatpush1.bf16.msra.mxu0 0
    %610 = vmatprep.subr.bf16.mxu0 0
    %611 = vmatpush1.bf16.msra.mxu0 0
    %612 = vmatprep.subr.bf16.mxu0 0
    %613 = vmatpush1.bf16.msra.mxu0 0
    %614 = vmatprep.subr.bf16.mxu0 0
    %615 = vmatpush1.bf16.msra.mxu0 0
    %616 = vmatprep.mubr.bf16.mxu0 0
    %617 = vmatmul.mubr.bf16.gmra.mrb[0].mxu0 %v582
    %v618 = vpop.f32.mrb[0].mxu0
    %v619 = vadd.f32 0.0, %v618
    %v620 = vpop.f32.mrb[0].mxu0
    %v621 = vpop.f32.mrb[0].mxu0
    %v622 = vadd.f32 0.0, %v621
    %v623 = vpop.f32.mrb[0].mxu0
    %624 = vdwg.mxu0
    %v627 = vunpack.c.l.b16 %v145
    %v628 = vunpack.c.l.b16 %v146
    %v629 = vpack.c.b16 %v628, %v627
    %v631 = vsel %vm531, %v629, 0
    %633 = vmatprep.subr.bf16.mxu0 0
    %634 = vmatpush1.bf16.msra.mxu0 %v512
    %635 = vmatprep.subr.bf16.mxu0 0
    %636 = vmatpush1.bf16.msra.mxu0 0
    %637 = vmatprep.subr.bf16.mxu0 0
    %638 = vmatpush1.bf16.msra.mxu0 0
    %639 = vmatprep.subr.bf16.mxu0 0
    %640 = vmatpush1.bf16.msra.mxu0 0
    %641 = vmatprep.subr.bf16.mxu0 0
    %642 = vmatpush1.bf16.msra.mxu0 0
    %643 = vmatprep.subr.bf16.mxu0 0
    %644 = vmatpush1.bf16.msra.mxu0 0
    %645 = vmatprep.subr.bf16.mxu0 0
    %646 = vmatpush1.bf16.msra.mxu0 0
    %647 = vmatprep.subr.bf16.mxu0 0
    %648 = vmatpush1.bf16.msra.mxu0 0
    %649 = vmatprep.subr.bf16.mxu0 0
    %650 = vmatpush1.bf16.msra.mxu0 0
    %651 = vmatprep.subr.bf16.mxu0 0
    %652 = vmatpush1.bf16.msra.mxu0 0
    %653 = vmatprep.subr.bf16.mxu0 0
    %654 = vmatpush1.bf16.msra.mxu0 0
    %655 = vmatprep.subr.bf16.mxu0 0
    %656 = vmatpush1.bf16.msra.mxu0 0
    %657 = vmatprep.subr.bf16.mxu0 0
    %658 = vmatpush1.bf16.msra.mxu0 0
    %659 = vmatprep.subr.bf16.mxu0 0
    %660 = vmatpush1.bf16.msra.mxu0 0
    %661 = vmatprep.subr.bf16.mxu0 0
    %662 = vmatpush1.bf16.msra.mxu0 0
    %663 = vmatprep.subr.bf16.mxu0 0
    %664 = vmatpush1.bf16.msra.mxu0 0
    %665 = vmatprep.mubr.bf16.mxu0 0
    %666 = vmatmul.mubr.bf16.gmra.mrb[0].mxu0 %v631
    %v667 = vpop.f32.mrb[0].mxu0
    %v668 = vadd.f32 0.0, %v667
    %v669 = vpop.f32.mrb[0].mxu0
    %v670 = vpop.f32.mrb[0].mxu0
    %v671 = vadd.f32 0.0, %v670
    %v672 = vpop.f32.mrb[0].mxu0
    %673 = vdwg.mxu0
    %v676 = vunpack.c.l.b16 %v147
    %v677 = vunpack.c.l.b16 %v148
    %v678 = vpack.c.b16 %v677, %v676
    %v680 = vsel %vm531, %v678, 0
    %682 = vmatprep.subr.bf16.mxu0 0
    %683 = vmatpush1.bf16.msra.mxu0 %v513
    %684 = vmatprep.subr.bf16.mxu0 0
    %685 = vmatpush1.bf16.msra.mxu0 0
    %686 = vmatprep.subr.bf16.mxu0 0
    %687 = vmatpush1.bf16.msra.mxu0 0
    %688 = vmatprep.subr.bf16.mxu0 0
    %689 = vmatpush1.bf16.msra.mxu0 0
    %690 = vmatprep.subr.bf16.mxu0 0
    %691 = vmatpush1.bf16.msra.mxu0 0
    %692 = vmatprep.subr.bf16.mxu0 0
    %693 = vmatpush1.bf16.msra.mxu0 0
    %694 = vmatprep.subr.bf16.mxu0 0
    %695 = vmatpush1.bf16.msra.mxu0 0
    %696 = vmatprep.subr.bf16.mxu0 0
    %697 = vmatpush1.bf16.msra.mxu0 0
    %698 = vmatprep.subr.bf16.mxu0 0
    %699 = vmatpush1.bf16.msra.mxu0 0
    %700 = vmatprep.subr.bf16.mxu0 0
    %701 = vmatpush1.bf16.msra.mxu0 0
    %702 = vmatprep.subr.bf16.mxu0 0
    %703 = vmatpush1.bf16.msra.mxu0 0
    %704 = vmatprep.subr.bf16.mxu0 0
    %705 = vmatpush1.bf16.msra.mxu0 0
    %706 = vmatprep.subr.bf16.mxu0 0
    %707 = vmatpush1.bf16.msra.mxu0 0
    %708 = vmatprep.subr.bf16.mxu0 0
    %709 = vmatpush1.bf16.msra.mxu0 0
    %710 = vmatprep.subr.bf16.mxu0 0
    %711 = vmatpush1.bf16.msra.mxu0 0
    %712 = vmatprep.subr.bf16.mxu0 0
    %713 = vmatpush1.bf16.msra.mxu0 0
    %714 = vmatprep.mubr.bf16.mxu0 0
    %715 = vmatmul.mubr.bf16.gmra.mrb[0].mxu0 %v680
    %v716 = vpop.f32.mrb[0].mxu0
    %v717 = vadd.f32 0.0, %v716
    %v718 = vpop.f32.mrb[0].mxu0
    %v719 = vpop.f32.mrb[0].mxu0
    %v720 = vadd.f32 0.0, %v719
    %v721 = vpop.f32.mrb[0].mxu0
    %722 = vdwg.mxu0
    %v725 = vunpack.c.l.b16 %v149
    %v726 = vunpack.c.l.b16 %v150
    %v727 = vpack.c.b16 %v726, %v725
    %v729 = vsel %vm531, %v727, 0
    %731 = vmatprep.subr.bf16.mxu0 0
    %732 = vmatpush1.bf16.msra.mxu0 %v514
    %733 = vmatprep.subr.bf16.mxu0 0
    %734 = vmatpush1.bf16.msra.mxu0 0
    %735 = vmatprep.subr.bf16.mxu0 0
    %736 = vmatpush1.bf16.msra.mxu0 0
    %737 = vmatprep.subr.bf16.mxu0 0
    %738 = vmatpush1.bf16.msra.mxu0 0
    %739 = vmatprep.subr.bf16.mxu0 0
    %740 = vmatpush1.bf16.msra.mxu0 0
    %741 = vmatprep.subr.bf16.mxu0 0
    %742 = vmatpush1.bf16.msra.mxu0 0
    %743 = vmatprep.subr.bf16.mxu0 0
    %744 = vmatpush1.bf16.msra.mxu0 0
    %745 = vmatprep.subr.bf16.mxu0 0
    %746 = vmatpush1.bf16.msra.mxu0 0
    %747 = vmatprep.subr.bf16.mxu0 0
    %748 = vmatpush1.bf16.msra.mxu0 0
    %749 = vmatprep.subr.bf16.mxu0 0
    %750 = vmatpush1.bf16.msra.mxu0 0
    %751 = vmatprep.subr.bf16.mxu0 0
    %752 = vmatpush1.bf16.msra.mxu0 0
    %753 = vmatprep.subr.bf16.mxu0 0
    %754 = vmatpush1.bf16.msra.mxu0 0
    %755 = vmatprep.subr.bf16.mxu0 0
    %756 = vmatpush1.bf16.msra.mxu0 0
    %757 = vmatprep.subr.bf16.mxu0 0
    %758 = vmatpush1.bf16.msra.mxu0 0
    %759 = vmatprep.subr.bf16.mxu0 0
    %760 = vmatpush1.bf16.msra.mxu0 0
    %761 = vmatprep.subr.bf16.mxu0 0
    %762 = vmatpush1.bf16.msra.mxu0 0
    %763 = vmatprep.mubr.bf16.mxu0 0
    %764 = vmatmul.mubr.bf16.gmra.mrb[0].mxu0 %v729
    %v765 = vpop.f32.mrb[0].mxu0
    %v766 = vadd.f32 0.0, %v765
    %v767 = vpop.f32.mrb[0].mxu0
    %v768 = vpop.f32.mrb[0].mxu0
    %v769 = vadd.f32 0.0, %v768
    %v770 = vpop.f32.mrb[0].mxu0
    %771 = vdwg.mxu0
    %v774 = vunpack.c.l.b16 %v151
    %v775 = vunpack.c.l.b16 %v152
    %v776 = vpack.c.b16 %v775, %v774
    %v778 = vsel %vm531, %v776, 0
    %780 = vmatprep.subr.bf16.mxu0 0
    %781 = vmatpush1.bf16.msra.mxu0 %v515
    %782 = vmatprep.subr.bf16.mxu0 0
    %783 = vmatpush1.bf16.msra.mxu0 0
    %784 = vmatprep.subr.bf16.mxu0 0
    %785 = vmatpush1.bf16.msra.mxu0 0
    %786 = vmatprep.subr.bf16.mxu0 0
    %787 = vmatpush1.bf16.msra.mxu0 0
    %788 = vmatprep.subr.bf16.mxu0 0
    %789 = vmatpush1.bf16.msra.mxu0 0
    %790 = vmatprep.subr.bf16.mxu0 0
    %791 = vmatpush1.bf16.msra.mxu0 0
    %792 = vmatprep.subr.bf16.mxu0 0
    %793 = vmatpush1.bf16.msra.mxu0 0
    %794 = vmatprep.subr.bf16.mxu0 0
    %795 = vmatpush1.bf16.msra.mxu0 0
    %796 = vmatprep.subr.bf16.mxu0 0
    %797 = vmatpush1.bf16.msra.mxu0 0
    %798 = vmatprep.subr.bf16.mxu0 0
    %799 = vmatpush1.bf16.msra.mxu0 0
    %800 = vmatprep.subr.bf16.mxu0 0
    %801 = vmatpush1.bf16.msra.mxu0 0
    %802 = vmatprep.subr.bf16.mxu0 0
    %803 = vmatpush1.bf16.msra.mxu0 0
    %804 = vmatprep.subr.bf16.mxu0 0
    %805 = vmatpush1.bf16.msra.mxu0 0
    %806 = vmatprep.subr.bf16.mxu0 0
    %807 = vmatpush1.bf16.msra.mxu0 0
    %808 = vmatprep.subr.bf16.mxu0 0
    %809 = vmatpush1.bf16.msra.mxu0 0
    %810 = vmatprep.subr.bf16.mxu0 0
    %811 = vmatpush1.bf16.msra.mxu0 0
    %812 = vmatprep.mubr.bf16.mxu0 0
    %813 = vmatmul.mubr.bf16.gmra.mrb[0].mxu0 %v778
    %v814 = vpop.f32.mrb[0].mxu0
    %v815 = vadd.f32 0.0, %v814
    %v816 = vpop.f32.mrb[0].mxu0
    %v817 = vpop.f32.mrb[0].mxu0
    %v818 = vadd.f32 0.0, %v817
    %v819 = vpop.f32.mrb[0].mxu0
    %820 = vdwg.mxu0
    %v823 = vunpack.c.l.b16 %v153
    %v824 = vunpack.c.l.b16 %v154
    %v825 = vpack.c.b16 %v824, %v823
    %v827 = vsel %vm531, %v825, 0
    %829 = vmatprep.subr.bf16.mxu0 0
    %830 = vmatpush1.bf16.msra.mxu0 %v516
    %831 = vmatprep.subr.bf16.mxu0 0
    %832 = vmatpush1.bf16.msra.mxu0 0
    %833 = vmatprep.subr.bf16.mxu0 0
    %834 = vmatpush1.bf16.msra.mxu0 0
    %835 = vmatprep.subr.bf16.mxu0 0
    %836 = vmatpush1.bf16.msra.mxu0 0
    %837 = vmatprep.subr.bf16.mxu0 0
    %838 = vmatpush1.bf16.msra.mxu0 0
    %839 = vmatprep.subr.bf16.mxu0 0
    %840 = vmatpush1.bf16.msra.mxu0 0
    %841 = vmatprep.subr.bf16.mxu0 0
    %842 = vmatpush1.bf16.msra.mxu0 0
    %843 = vmatprep.subr.bf16.mxu0 0
    %844 = vmatpush1.bf16.msra.mxu0 0
    %845 = vmatprep.subr.bf16.mxu0 0
    %846 = vmatpush1.bf16.msra.mxu0 0
    %847 = vmatprep.subr.bf16.mxu0 0
    %848 = vmatpush1.bf16.msra.mxu0 0
    %849 = vmatprep.subr.bf16.mxu0 0
    %850 = vmatpush1.bf16.msra.mxu0 0
    %851 = vmatprep.subr.bf16.mxu0 0
    %852 = vmatpush1.bf16.msra.mxu0 0
    %853 = vmatprep.subr.bf16.mxu0 0
    %854 = vmatpush1.bf16.msra.mxu0 0
    %855 = vmatprep.subr.bf16.mxu0 0
    %856 = vmatpush1.bf16.msra.mxu0 0
    %857 = vmatprep.subr.bf16.mxu0 0
    %858 = vmatpush1.bf16.msra.mxu0 0
    %859 = vmatprep.subr.bf16.mxu0 0
    %860 = vmatpush1.bf16.msra.mxu0 0
    %861 = vmatprep.mubr.bf16.mxu0 0
    %862 = vmatmul.mubr.bf16.gmra.mrb[0].mxu0 %v827
    %v863 = vpop.f32.mrb[0].mxu0
    %v864 = vadd.f32 0.0, %v863
    %v865 = vpop.f32.mrb[0].mxu0
    %v866 = vpop.f32.mrb[0].mxu0
    %v867 = vadd.f32 0.0, %v866
    %v868 = vpop.f32.mrb[0].mxu0
    %869 = vdwg.mxu0
    %v872 = vunpack.c.l.b16 %v155
    %v873 = vunpack.c.l.b16 %v156
    %v874 = vpack.c.b16 %v873, %v872
    %v876 = vsel %vm531, %v874, 0
    %878 = vmatprep.subr.bf16.mxu0 0
    %879 = vmatpush1.bf16.msra.mxu0 %v517
    %880 = vmatprep.subr.bf16.mxu0 0
    %881 = vmatpush1.bf16.msra.mxu0 0
    %882 = vmatprep.subr.bf16.mxu0 0
    %883 = vmatpush1.bf16.msra.mxu0 0
    %884 = vmatprep.subr.bf16.mxu0 0
    %885 = vmatpush1.bf16.msra.mxu0 0
    %886 = vmatprep.subr.bf16.mxu0 0
    %887 = vmatpush1.bf16.msra.mxu0 0
    %888 = vmatprep.subr.bf16.mxu0 0
    %889 = vmatpush1.bf16.msra.mxu0 0
    %890 = vmatprep.subr.bf16.mxu0 0
    %891 = vmatpush1.bf16.msra.mxu0 0
    %892 = vmatprep.subr.bf16.mxu0 0
    %893 = vmatpush1.bf16.msra.mxu0 0
    %894 = vmatprep.subr.bf16.mxu0 0
    %895 = vmatpush1.bf16.msra.mxu0 0
    %896 = vmatprep.subr.bf16.mxu0 0
    %897 = vmatpush1.bf16.msra.mxu0 0
    %898 = vmatprep.subr.bf16.mxu0 0
    %899 = vmatpush1.bf16.msra.mxu0 0
    %900 = vmatprep.subr.bf16.mxu0 0
    %901 = vmatpush1.bf16.msra.mxu0 0
    %902 = vmatprep.subr.bf16.mxu0 0
    %903 = vmatpush1.bf16.msra.mxu0 0
    %904 = vmatprep.subr.bf16.mxu0 0
    %905 = vmatpush1.bf16.msra.mxu0 0
    %906 = vmatprep.subr.bf16.mxu0 0
    %907 = vmatpush1.bf16.msra.mxu0 0
    %908 = vmatprep.subr.bf16.mxu0 0
    %909 = vmatpush1.bf16.msra.mxu0 0
    %910 = vmatprep.mubr.bf16.mxu0 0
    %911 = vmatmul.mubr.bf16.gmra.mrb[0].mxu0 %v876
    %v912 = vpop.f32.mrb[0].mxu0
    %v913 = vadd.f32 0.0, %v912
    %v914 = vpop.f32.mrb[0].mxu0
    %v915 = vpop.f32.mrb[0].mxu0
    %v916 = vadd.f32 0.0, %v915
    %v917 = vpop.f32.mrb[0].mxu0
    %918 = vdwg.mxu0
    %v921 = vunpack.c.l.b16 %v157
    %v922 = vunpack.c.l.b16 %v158
    %v923 = vpack.c.b16 %v922, %v921
    %v925 = vsel %vm531, %v923, 0
    %927 = vmatprep.subr.bf16.mxu0 0
    %928 = vmatpush1.bf16.msra.mxu0 %v518
    %929 = vmatprep.subr.bf16.mxu0 0
    %930 = vmatpush1.bf16.msra.mxu0 0
    %931 = vmatprep.subr.bf16.mxu0 0
    %932 = vmatpush1.bf16.msra.mxu0 0
    %933 = vmatprep.subr.bf16.mxu0 0
    %934 = vmatpush1.bf16.msra.mxu0 0
    %935 = vmatprep.subr.bf16.mxu0 0
    %936 = vmatpush1.bf16.msra.mxu0 0
    %937 = vmatprep.subr.bf16.mxu0 0
    %938 = vmatpush1.bf16.msra.mxu0 0
    %939 = vmatprep.subr.bf16.mxu0 0
    %940 = vmatpush1.bf16.msra.mxu0 0
    %941 = vmatprep.subr.bf16.mxu0 0
    %942 = vmatpush1.bf16.msra.mxu0 0
    %943 = vmatprep.subr.bf16.mxu0 0
    %944 = vmatpush1.bf16.msra.mxu0 0
    %945 = vmatprep.subr.bf16.mxu0 0
    %946 = vmatpush1.bf16.msra.mxu0 0
    %947 = vmatprep.subr.bf16.mxu0 0
    %948 = vmatpush1.bf16.msra.mxu0 0
    %949 = vmatprep.subr.bf16.mxu0 0
    %950 = vmatpush1.bf16.msra.mxu0 0
    %951 = vmatprep.subr.bf16.mxu0 0
    %952 = vmatpush1.bf16.msra.mxu0 0
    %953 = vmatprep.subr.bf16.mxu0 0
    %954 = vmatpush1.bf16.msra.mxu0 0
    %955 = vmatprep.subr.bf16.mxu0 0
    %956 = vmatpush1.bf16.msra.mxu0 0
    %957 = vmatprep.subr.bf16.mxu0 0
    %958 = vmatpush1.bf16.msra.mxu0 0
    %959 = vmatprep.mubr.bf16.mxu0 0
    %960 = vmatmul.mubr.bf16.gmra.mrb[0].mxu0 %v925
    %v961 = vpop.f32.mrb[0].mxu0
    %v962 = vadd.f32 0.0, %v961
    %v963 = vpop.f32.mrb[0].mxu0
    %v964 = vpop.f32.mrb[0].mxu0
    %v965 = vadd.f32 0.0, %v964
    %v966 = vpop.f32.mrb[0].mxu0
    %967 = vdwg.mxu0
    %v970 = vunpack.c.l.b16 %v159
    %v971 = vunpack.c.l.b16 %v160
    %v972 = vpack.c.b16 %v971, %v970
    %v974 = vsel %vm531, %v972, 0
    %976 = vmatprep.subr.bf16.mxu0 0
    %977 = vmatpush1.bf16.msra.mxu0 %v519
    %978 = vmatprep.subr.bf16.mxu0 0
    %979 = vmatpush1.bf16.msra.mxu0 0
    %980 = vmatprep.subr.bf16.mxu0 0
    %981 = vmatpush1.bf16.msra.mxu0 0
    %982 = vmatprep.subr.bf16.mxu0 0
    %983 = vmatpush1.bf16.msra.mxu0 0
    %984 = vmatprep.subr.bf16.mxu0 0
    %985 = vmatpush1.bf16.msra.mxu0 0
    %986 = vmatprep.subr.bf16.mxu0 0
    %987 = vmatpush1.bf16.msra.mxu0 0
    %988 = vmatprep.subr.bf16.mxu0 0
    %989 = vmatpush1.bf16.msra.mxu0 0
    %990 = vmatprep.subr.bf16.mxu0 0
    %991 = vmatpush1.bf16.msra.mxu0 0
    %992 = vmatprep.subr.bf16.mxu0 0
    %993 = vmatpush1.bf16.msra.mxu0 0
    %994 = vmatprep.subr.bf16.mxu0 0
    %995 = vmatpush1.bf16.msra.mxu0 0
    %996 = vmatprep.subr.bf16.mxu0 0
    %997 = vmatpush1.bf16.msra.mxu0 0
    %998 = vmatprep.subr.bf16.mxu0 0
    %999 = vmatpush1.bf16.msra.mxu0 0
    %1000 = vmatprep.subr.bf16.mxu0 0
    %1001 = vmatpush1.bf16.msra.mxu0 0
    %1002 = vmatprep.subr.bf16.mxu0 0
    %1003 = vmatpush1.bf16.msra.mxu0 0
    %1004 = vmatprep.subr.bf16.mxu0 0
    %1005 = vmatpush1.bf16.msra.mxu0 0
    %1006 = vmatprep.subr.bf16.mxu0 0
    %1007 = vmatpush1.bf16.msra.mxu0 0
    %1008 = vmatprep.mubr.bf16.mxu0 0
    %1009 = vmatmul.mubr.bf16.gmra.mrb[0].mxu0 %v974
    %v1010 = vpop.f32.mrb[0].mxu0
    %v1011 = vadd.f32 0.0, %v1010
    %v1012 = vpop.f32.mrb[0].mxu0
    %v1013 = vpop.f32.mrb[0].mxu0
    %v1014 = vadd.f32 0.0, %v1013
    %v1015 = vpop.f32.mrb[0].mxu0
    %1016 = vdwg.mxu0
    %v1019 = vunpack.c.l.b16 %v161
    %v1020 = vunpack.c.l.b16 %v162
    %v1021 = vpack.c.b16 %v1020, %v1019
    %v1023 = vsel %vm531, %v1021, 0
    %1025 = vmatprep.subr.bf16.mxu0 0
    %1026 = vmatpush1.bf16.msra.mxu0 %v520
    %1027 = vmatprep.subr.bf16.mxu0 0
    %1028 = vmatpush1.bf16.msra.mxu0 0
    %1029 = vmatprep.subr.bf16.mxu0 0
    %1030 = vmatpush1.bf16.msra.mxu0 0
    %1031 = vmatprep.subr.bf16.mxu0 0
    %1032 = vmatpush1.bf16.msra.mxu0 0
    %1033 = vmatprep.subr.bf16.mxu0 0
    %1034 = vmatpush1.bf16.msra.mxu0 0
    %1035 = vmatprep.subr.bf16.mxu0 0
    %1036 = vmatpush1.bf16.msra.mxu0 0
    %1037 = vmatprep.subr.bf16.mxu0 0
    %1038 = vmatpush1.bf16.msra.mxu0 0
    %1039 = vmatprep.subr.bf16.mxu0 0
    %1040 = vmatpush1.bf16.msra.mxu0 0
    %1041 = vmatprep.subr.bf16.mxu0 0
    %1042 = vmatpush1.bf16.msra.mxu0 0
    %1043 = vmatprep.subr.bf16.mxu0 0
    %1044 = vmatpush1.bf16.msra.mxu0 0
    %1045 = vmatprep.subr.bf16.mxu0 0
    %1046 = vmatpush1.bf16.msra.mxu0 0
    %1047 = vmatprep.subr.bf16.mxu0 0
    %1048 = vmatpush1.bf16.msra.mxu0 0
    %1049 = vmatprep.subr.bf16.mxu0 0
    %1050 = vmatpush1.bf16.msra.mxu0 0
    %1051 = vmatprep.subr.bf16.mxu0 0
    %1052 = vmatpush1.bf16.msra.mxu0 0
    %1053 = vmatprep.subr.bf16.mxu0 0
    %1054 = vmatpush1.bf16.msra.mxu0 0
    %1055 = vmatprep.subr.bf16.mxu0 0
    %1056 = vmatpush1.bf16.msra.mxu0 0
    %1057 = vmatprep.mubr.bf16.mxu0 0
    %1058 = vmatmul.mubr.bf16.gmra.mrb[0].mxu0 %v1023
    %v1059 = vpop.f32.mrb[0].mxu0
    %v1060 = vadd.f32 0.0, %v1059
    %v1061 = vpop.f32.mrb[0].mxu0
    %v1062 = vpop.f32.mrb[0].mxu0
    %v1063 = vadd.f32 0.0, %v1062
    %v1064 = vpop.f32.mrb[0].mxu0
    %1065 = vdwg.mxu0
    %v1068 = vunpack.c.l.b16 %v163
    %v1069 = vunpack.c.l.b16 %v164
    %v1070 = vpack.c.b16 %v1069, %v1068
    %v1072 = vsel %vm531, %v1070, 0
    %1074 = vmatprep.subr.bf16.mxu0 0
    %1075 = vmatpush1.bf16.msra.mxu0 %v521
    %1076 = vmatprep.subr.bf16.mxu0 0
    %1077 = vmatpush1.bf16.msra.mxu0 0
    %1078 = vmatprep.subr.bf16.mxu0 0
    %1079 = vmatpush1.bf16.msra.mxu0 0
    %1080 = vmatprep.subr.bf16.mxu0 0
    %1081 = vmatpush1.bf16.msra.mxu0 0
    %1082 = vmatprep.subr.bf16.mxu0 0
    %1083 = vmatpush1.bf16.msra.mxu0 0
    %1084 = vmatprep.subr.bf16.mxu0 0
    %1085 = vmatpush1.bf16.msra.mxu0 0
    %1086 = vmatprep.subr.bf16.mxu0 0
    %1087 = vmatpush1.bf16.msra.mxu0 0
    %1088 = vmatprep.subr.bf16.mxu0 0
    %1089 = vmatpush1.bf16.msra.mxu0 0
    %1090 = vmatprep.subr.bf16.mxu0 0
    %1091 = vmatpush1.bf16.msra.mxu0 0
    %1092 = vmatprep.subr.bf16.mxu0 0
    %1093 = vmatpush1.bf16.msra.mxu0 0
    %1094 = vmatprep.subr.bf16.mxu0 0
    %1095 = vmatpush1.bf16.msra.mxu0 0
    %1096 = vmatprep.subr.bf16.mxu0 0
    %1097 = vmatpush1.bf16.msra.mxu0 0
    %1098 = vmatprep.subr.bf16.mxu0 0
    %1099 = vmatpush1.bf16.msra.mxu0 0
    %1100 = vmatprep.subr.bf16.mxu0 0
    %1101 = vmatpush1.bf16.msra.mxu0 0
    %1102 = vmatprep.subr.bf16.mxu0 0
    %1103 = vmatpush1.bf16.msra.mxu0 0
    %1104 = vmatprep.subr.bf16.mxu0 0
    %1105 = vmatpush1.bf16.msra.mxu0 0
    %1106 = vmatprep.mubr.bf16.mxu0 0
    %1107 = vmatmul.mubr.bf16.gmra.mrb[0].mxu0 %v1072
    %v1108 = vpop.f32.mrb[0].mxu0
    %v1109 = vadd.f32 0.0, %v1108
    %v1110 = vpop.f32.mrb[0].mxu0
    %v1111 = vpop.f32.mrb[0].mxu0
    %v1112 = vadd.f32 0.0, %v1111
    %v1113 = vpop.f32.mrb[0].mxu0
    %1114 = vdwg.mxu0
    %v1117 = vunpack.c.l.b16 %v165
    %v1118 = vunpack.c.l.b16 %v166
    %v1119 = vpack.c.b16 %v1118, %v1117
    %v1121 = vsel %vm531, %v1119, 0
    %1123 = vmatprep.subr.bf16.mxu0 0
    %1124 = vmatpush1.bf16.msra.mxu0 %v522
    %1125 = vmatprep.subr.bf16.mxu0 0
    %1126 = vmatpush1.bf16.msra.mxu0 0
    %1127 = vmatprep.subr.bf16.mxu0 0
    %1128 = vmatpush1.bf16.msra.mxu0 0
    %1129 = vmatprep.subr.bf16.mxu0 0
    %1130 = vmatpush1.bf16.msra.mxu0 0
    %1131 = vmatprep.subr.bf16.mxu0 0
    %1132 = vmatpush1.bf16.msra.mxu0 0
    %1133 = vmatprep.subr.bf16.mxu0 0
    %1134 = vmatpush1.bf16.msra.mxu0 0
    %1135 = vmatprep.subr.bf16.mxu0 0
    %1136 = vmatpush1.bf16.msra.mxu0 0
    %1137 = vmatprep.subr.bf16.mxu0 0
    %1138 = vmatpush1.bf16.msra.mxu0 0
    %1139 = vmatprep.subr.bf16.mxu0 0
    %1140 = vmatpush1.bf16.msra.mxu0 0
    %1141 = vmatprep.subr.bf16.mxu0 0
    %1142 = vmatpush1.bf16.msra.mxu0 0
    %1143 = vmatprep.subr.bf16.mxu0 0
    %1144 = vmatpush1.bf16.msra.mxu0 0
    %1145 = vmatprep.subr.bf16.mxu0 0
    %1146 = vmatpush1.bf16.msra.mxu0 0
    %1147 = vmatprep.subr.bf16.mxu0 0
    %1148 = vmatpush1.bf16.msra.mxu0 0
    %1149 = vmatprep.subr.bf16.mxu0 0
    %1150 = vmatpush1.bf16.msra.mxu0 0
    %1151 = vmatprep.subr.bf16.mxu0 0
    %1152 = vmatpush1.bf16.msra.mxu0 0
    %1153 = vmatprep.subr.bf16.mxu0 0
    %1154 = vmatpush1.bf16.msra.mxu0 0
    %1155 = vmatprep.mubr.bf16.mxu0 0
    %1156 = vmatmul.mubr.bf16.gmra.mrb[0].mxu0 %v1121
    %v1157 = vpop.f32.mrb[0].mxu0
    %v1158 = vadd.f32 0.0, %v1157
    %v1159 = vpop.f32.mrb[0].mxu0
    %v1160 = vpop.f32.mrb[0].mxu0
    %v1161 = vadd.f32 0.0, %v1160
    %v1162 = vpop.f32.mrb[0].mxu0
    %1163 = vdwg.mxu0
    %v1166 = vunpack.c.l.b16 %v167
    %v1167 = vunpack.c.l.b16 %v168
    %v1168 = vpack.c.b16 %v1167, %v1166
    %v1170 = vsel %vm531, %v1168, 0
    %1172 = vmatprep.subr.bf16.mxu0 0
    %1173 = vmatpush1.bf16.msra.mxu0 %v523
    %1174 = vmatprep.subr.bf16.mxu0 0
    %1175 = vmatpush1.bf16.msra.mxu0 0
    %1176 = vmatprep.subr.bf16.mxu0 0
    %1177 = vmatpush1.bf16.msra.mxu0 0
    %1178 = vmatprep.subr.bf16.mxu0 0
    %1179 = vmatpush1.bf16.msra.mxu0 0
    %1180 = vmatprep.subr.bf16.mxu0 0
    %1181 = vmatpush1.bf16.msra.mxu0 0
    %1182 = vmatprep.subr.bf16.mxu0 0
    %1183 = vmatpush1.bf16.msra.mxu0 0
    %1184 = vmatprep.subr.bf16.mxu0 0
    %1185 = vmatpush1.bf16.msra.mxu0 0
    %1186 = vmatprep.subr.bf16.mxu0 0
    %1187 = vmatpush1.bf16.msra.mxu0 0
    %1188 = vmatprep.subr.bf16.mxu0 0
    %1189 = vmatpush1.bf16.msra.mxu0 0
    %1190 = vmatprep.subr.bf16.mxu0 0
    %1191 = vmatpush1.bf16.msra.mxu0 0
    %1192 = vmatprep.subr.bf16.mxu0 0
    %1193 = vmatpush1.bf16.msra.mxu0 0
    %1194 = vmatprep.subr.bf16.mxu0 0
    %1195 = vmatpush1.bf16.msra.mxu0 0
    %1196 = vmatprep.subr.bf16.mxu0 0
    %1197 = vmatpush1.bf16.msra.mxu0 0
    %1198 = vmatprep.subr.bf16.mxu0 0
    %1199 = vmatpush1.bf16.msra.mxu0 0
    %1200 = vmatprep.subr.bf16.mxu0 0
    %1201 = vmatpush1.bf16.msra.mxu0 0
    %1202 = vmatprep.subr.bf16.mxu0 0
    %1203 = vmatpush1.bf16.msra.mxu0 0
    %1204 = vmatprep.mubr.bf16.mxu0 0
    %1205 = vmatmul.mubr.bf16.gmra.mrb[0].mxu0 %v1170
    %v1206 = vpop.f32.mrb[0].mxu0
    %v1207 = vadd.f32 0.0, %v1206
    %v1208 = vpop.f32.mrb[0].mxu0
    %v1209 = vpop.f32.mrb[0].mxu0
    %v1210 = vadd.f32 0.0, %v1209
    %v1211 = vpop.f32.mrb[0].mxu0
    %1212 = vdwg.mxu0
    %v1215 = vunpack.c.l.b16 %v169
    %v1216 = vunpack.c.l.b16 %v170
    %v1217 = vpack.c.b16 %v1216, %v1215
    %v1219 = vsel %vm531, %v1217, 0
    %1221 = vmatprep.subr.bf16.mxu0 0
    %1222 = vmatpush1.bf16.msra.mxu0 %v524
    %1223 = vmatprep.subr.bf16.mxu0 0
    %1224 = vmatpush1.bf16.msra.mxu0 0
    %1225 = vmatprep.subr.bf16.mxu0 0
    %1226 = vmatpush1.bf16.msra.mxu0 0
    %1227 = vmatprep.subr.bf16.mxu0 0
    %1228 = vmatpush1.bf16.msra.mxu0 0
    %1229 = vmatprep.subr.bf16.mxu0 0
    %1230 = vmatpush1.bf16.msra.mxu0 0
    %1231 = vmatprep.subr.bf16.mxu0 0
    %1232 = vmatpush1.bf16.msra.mxu0 0
    %1233 = vmatprep.subr.bf16.mxu0 0
    %1234 = vmatpush1.bf16.msra.mxu0 0
    %1235 = vmatprep.subr.bf16.mxu0 0
    %1236 = vmatpush1.bf16.msra.mxu0 0
    %1237 = vmatprep.subr.bf16.mxu0 0
    %1238 = vmatpush1.bf16.msra.mxu0 0
    %1239 = vmatprep.subr.bf16.mxu0 0
    %1240 = vmatpush1.bf16.msra.mxu0 0
    %1241 = vmatprep.subr.bf16.mxu0 0
    %1242 = vmatpush1.bf16.msra.mxu0 0
    %1243 = vmatprep.subr.bf16.mxu0 0
    %1244 = vmatpush1.bf16.msra.mxu0 0
    %1245 = vmatprep.subr.bf16.mxu0 0
    %1246 = vmatpush1.bf16.msra.mxu0 0
    %1247 = vmatprep.subr.bf16.mxu0 0
    %1248 = vmatpush1.bf16.msra.mxu0 0
    %1249 = vmatprep.subr.bf16.mxu0 0
    %1250 = vmatpush1.bf16.msra.mxu0 0
    %1251 = vmatprep.subr.bf16.mxu0 0
    %1252 = vmatpush1.bf16.msra.mxu0 0
    %1253 = vmatprep.mubr.bf16.mxu0 0
    %1254 = vmatmul.mubr.bf16.gmra.mrb[0].mxu0 %v1219
    %v1255 = vpop.f32.mrb[0].mxu0
    %v1256 = vadd.f32 0.0, %v1255
    %v1257 = vpop.f32.mrb[0].mxu0
    %v1258 = vpop.f32.mrb[0].mxu0
    %v1259 = vadd.f32 0.0, %v1258
    %v1260 = vpop.f32.mrb[0].mxu0
    %1261 = vdwg.mxu0
    %v1264 = vunpack.c.l.b16 %v171
    %v1265 = vunpack.c.l.b16 %v172
    %v1266 = vpack.c.b16 %v1265, %v1264
    %v1268 = vsel %vm531, %v1266, 0
    %1270 = vmatprep.subr.bf16.mxu0 0
    %1271 = vmatpush1.bf16.msra.mxu0 %v525
    %1272 = vmatprep.subr.bf16.mxu0 0
    %1273 = vmatpush1.bf16.msra.mxu0 0
    %1274 = vmatprep.subr.bf16.mxu0 0
    %1275 = vmatpush1.bf16.msra.mxu0 0
    %1276 = vmatprep.subr.bf16.mxu0 0
    %1277 = vmatpush1.bf16.msra.mxu0 0
    %1278 = vmatprep.subr.bf16.mxu0 0
    %1279 = vmatpush1.bf16.msra.mxu0 0
    %1280 = vmatprep.subr.bf16.mxu0 0
    %1281 = vmatpush1.bf16.msra.mxu0 0
    %1282 = vmatprep.subr.bf16.mxu0 0
    %1283 = vmatpush1.bf16.msra.mxu0 0
    %1284 = vmatprep.subr.bf16.mxu0 0
    %1285 = vmatpush1.bf16.msra.mxu0 0
    %1286 = vmatprep.subr.bf16.mxu0 0
    %1287 = vmatpush1.bf16.msra.mxu0 0
    %1288 = vmatprep.subr.bf16.mxu0 0
    %1289 = vmatpush1.bf16.msra.mxu0 0
    %1290 = vmatprep.subr.bf16.mxu0 0
    %1291 = vmatpush1.bf16.msra.mxu0 0
    %1292 = vmatprep.subr.bf16.mxu0 0
    %1293 = vmatpush1.bf16.msra.mxu0 0
    %1294 = vmatprep.subr.bf16.mxu0 0
    %1295 = vmatpush1.bf16.msra.mxu0 0
    %1296 = vmatprep.subr.bf16.mxu0 0
    %1297 = vmatpush1.bf16.msra.mxu0 0
    %1298 = vmatprep.subr.bf16.mxu0 0
    %1299 = vmatpush1.bf16.msra.mxu0 0
    %1300 = vmatprep.subr.bf16.mxu0 0
    %1301 = vmatpush1.bf16.msra.mxu0 0
    %1302 = vmatprep.mubr.bf16.mxu0 0
    %1303 = vmatmul.mubr.bf16.gmra.mrb[0].mxu0 %v1268
    %v1304 = vpop.f32.mrb[0].mxu0
    %v1305 = vadd.f32 0.0, %v1304
    %v1306 = vpop.f32.mrb[0].mxu0
    %v1307 = vpop.f32.mrb[0].mxu0
    %v1308 = vadd.f32 0.0, %v1307
    %v1309 = vpop.f32.mrb[0].mxu0
    %1310 = vdwg.mxu0
    %v1311 = vpack.c.bf16 %v573, %v570
    %v1312 = vpack.c.bf16 %v622, %v619
    %v1313 = vpack.c.bf16 %v671, %v668
    %v1314 = vpack.c.bf16 %v720, %v717
    %v1315 = vpack.c.bf16 %v769, %v766
    %v1316 = vpack.c.bf16 %v818, %v815
    %v1317 = vpack.c.bf16 %v867, %v864
    %v1318 = vpack.c.bf16 %v916, %v913
    %v1319 = vpack.c.bf16 %v965, %v962
    %v1320 = vpack.c.bf16 %v1014, %v1011
    %v1321 = vpack.c.bf16 %v1063, %v1060
    %v1322 = vpack.c.bf16 %v1112, %v1109
    %v1323 = vpack.c.bf16 %v1161, %v1158
    %v1324 = vpack.c.bf16 %v1210, %v1207
    %v1325 = vpack.c.bf16 %v1259, %v1256
    %v1326 = vpack.c.bf16 %v1308, %v1305
    %v1343 = vunpack.c.l.b16 %v93
    %v1344 = vunpack.c.l.b16 %v94
    %v1345 = vunpack.c.l.b16 %v95
    %v1346 = vunpack.c.l.b16 %v96
    %v1347 = vunpack.c.l.b16 %v97
    %v1348 = vunpack.c.l.b16 %v98
    %v1349 = vunpack.c.l.b16 %v99
    %v1350 = vunpack.c.l.b16 %v100
    %v1351 = vunpack.c.l.b16 %v101
    %v1352 = vunpack.c.l.b16 %v102
    %v1353 = vunpack.c.l.b16 %v103
    %v1354 = vunpack.c.l.b16 %v104
    %v1355 = vunpack.c.l.b16 %v105
    %v1356 = vunpack.c.l.b16 %v106
    %v1357 = vunpack.c.l.b16 %v107
    %v1358 = vunpack.c.l.b16 %v108
    %v1359 = vpack.c.b16 %v1344, %v1343
    %v1360 = vpack.c.b16 %v1346, %v1345
    %v1361 = vpack.c.b16 %v1348, %v1347
    %v1362 = vpack.c.b16 %v1350, %v1349
    %v1363 = vpack.c.b16 %v1352, %v1351
    %v1364 = vpack.c.b16 %v1354, %v1353
    %v1365 = vpack.c.b16 %v1356, %v1355
    %v1366 = vpack.c.b16 %v1358, %v1357
    %1375 = vmatprep.subr.bf16.mxu0 0
    %1376 = vmatpush1.bf16.msra.mxu0 %v1359
    %1377 = vmatprep.subr.bf16.mxu0 0
    %1378 = vmatpush1.bf16.msra.mxu0 %v1360
    %1379 = vmatprep.subr.bf16.mxu0 0
    %1380 = vmatpush1.bf16.msra.mxu0 %v1361
    %1381 = vmatprep.subr.bf16.mxu0 0
    %1382 = vmatpush1.bf16.msra.mxu0 %v1362
    %1383 = vmatprep.subr.bf16.mxu0 0
    %1384 = vmatpush1.bf16.msra.mxu0 %v1363
    %1385 = vmatprep.subr.bf16.mxu0 0
    %1386 = vmatpush1.bf16.msra.mxu0 %v1364
    %1387 = vmatprep.subr.bf16.mxu0 0
    %1388 = vmatpush1.bf16.msra.mxu0 %v1365
    %1389 = vmatprep.subr.bf16.mxu0 0
    %1390 = vmatpush1.bf16.msra.mxu0 %v1366
    %1391 = vmatprep.subr.bf16.mxu0 0
    %1392 = vmatpush1.bf16.msra.mxu0 0
    %1393 = vmatprep.subr.bf16.mxu0 0
    %1394 = vmatpush1.bf16.msra.mxu0 0
    %1395 = vmatprep.subr.bf16.mxu0 0
    %1396 = vmatpush1.bf16.msra.mxu0 0
    %1397 = vmatprep.subr.bf16.mxu0 0
    %1398 = vmatpush1.bf16.msra.mxu0 0
    %1399 = vmatprep.subr.bf16.mxu0 0
    %1400 = vmatpush1.bf16.msra.mxu0 0
    %1401 = vmatprep.subr.bf16.mxu0 0
    %1402 = vmatpush1.bf16.msra.mxu0 0
    %1403 = vmatprep.subr.bf16.mxu0 0
    %1404 = vmatpush1.bf16.msra.mxu0 0
    %1405 = vmatprep.subr.bf16.mxu0 0
    %1406 = vmatpush1.bf16.msra.mxu0 0
    %1407 = vmatprep.mubr.bf16.mxu0 0
    %1408 = vmatmul.mubr.bf16.gmra.mrb[0].mxu0 %v1311
    %v1409 = vpop.f32.mrb[0].mxu0
    %v1410 = vadd.f32 0.0, %v1409
    %v1411 = vpop.f32.mrb[0].mxu0
    %v1412 = vpop.f32.mrb[0].mxu0
    %v1413 = vadd.f32 0.0, %v1412
    %v1414 = vpop.f32.mrb[0].mxu0
    %1415 = vmatprep.mubr.bf16.mxu0 0
    %1416 = vmatmul.mubr.bf16.gmra.mrb[0].mxu0 %v1312
    %v1417 = vpop.f32.mrb[0].mxu0
    %v1418 = vadd.f32 0.0, %v1417
    %v1419 = vpop.f32.mrb[0].mxu0
    %v1420 = vpop.f32.mrb[0].mxu0
    %v1421 = vadd.f32 0.0, %v1420
    %v1422 = vpop.f32.mrb[0].mxu0
    %1423 = vmatprep.mubr.bf16.mxu0 0
    %1424 = vmatmul.mubr.bf16.gmra.mrb[0].mxu0 %v1313
    %v1425 = vpop.f32.mrb[0].mxu0
    %v1426 = vadd.f32 0.0, %v1425
    %v1427 = vpop.f32.mrb[0].mxu0
    %v1428 = vpop.f32.mrb[0].mxu0
    %v1429 = vadd.f32 0.0, %v1428
    %v1430 = vpop.f32.mrb[0].mxu0
    %1431 = vmatprep.mubr.bf16.mxu0 0
    %1432 = vmatmul.mubr.bf16.gmra.mrb[0].mxu0 %v1314
    %v1433 = vpop.f32.mrb[0].mxu0
    %v1434 = vadd.f32 0.0, %v1433
    %v1435 = vpop.f32.mrb[0].mxu0
    %v1436 = vpop.f32.mrb[0].mxu0
    %v1437 = vadd.f32 0.0, %v1436
    %v1438 = vpop.f32.mrb[0].mxu0
    %1439 = vmatprep.mubr.bf16.mxu0 0
    %1440 = vmatmul.mubr.bf16.gmra.mrb[0].mxu0 %v1315
    %v1441 = vpop.f32.mrb[0].mxu0
    %v1442 = vadd.f32 0.0, %v1441
    %v1443 = vpop.f32.mrb[0].mxu0
    %v1444 = vpop.f32.mrb[0].mxu0
    %v1445 = vadd.f32 0.0, %v1444
    %v1446 = vpop.f32.mrb[0].mxu0
    %1447 = vmatprep.mubr.bf16.mxu0 0
    %1448 = vmatmul.mubr.bf16.gmra.mrb[0].mxu0 %v1316
    %v1449 = vpop.f32.mrb[0].mxu0
    %v1450 = vadd.f32 0.0, %v1449
    %v1451 = vpop.f32.mrb[0].mxu0
    %v1452 = vpop.f32.mrb[0].mxu0
    %v1453 = vadd.f32 0.0, %v1452
    %v1454 = vpop.f32.mrb[0].mxu0
    %1455 = vmatprep.mubr.bf16.mxu0 0
    %1456 = vmatmul.mubr.bf16.gmra.mrb[0].mxu0 %v1317
    %v1457 = vpop.f32.mrb[0].mxu0
    %v1458 = vadd.f32 0.0, %v1457
    %v1459 = vpop.f32.mrb[0].mxu0
    %v1460 = vpop.f32.mrb[0].mxu0
    %v1461 = vadd.f32 0.0, %v1460
    %v1462 = vpop.f32.mrb[0].mxu0
    %1463 = vmatprep.mubr.bf16.mxu0 0
    %1464 = vmatmul.mubr.bf16.gmra.mrb[0].mxu0 %v1318
    %v1465 = vpop.f32.mrb[0].mxu0
    %v1466 = vadd.f32 0.0, %v1465
    %v1467 = vpop.f32.mrb[0].mxu0
    %v1468 = vpop.f32.mrb[0].mxu0
    %v1469 = vadd.f32 0.0, %v1468
    %v1470 = vpop.f32.mrb[0].mxu0
    %1471 = vmatprep.mubr.bf16.mxu0 0
    %1472 = vmatmul.mubr.bf16.gmra.mrb[0].mxu0 %v1319
    %v1473 = vpop.f32.mrb[0].mxu0
    %v1474 = vadd.f32 0.0, %v1473
    %v1475 = vpop.f32.mrb[0].mxu0
    %v1476 = vpop.f32.mrb[0].mxu0
    %v1477 = vadd.f32 0.0, %v1476
    %v1478 = vpop.f32.mrb[0].mxu0
    %1479 = vmatprep.mubr.bf16.mxu0 0
    %1480 = vmatmul.mubr.bf16.gmra.mrb[0].mxu0 %v1320
    %v1481 = vpop.f32.mrb[0].mxu0
    %v1482 = vadd.f32 0.0, %v1481
    %v1483 = vpop.f32.mrb[0].mxu0
    %v1484 = vpop.f32.mrb[0].mxu0
    %v1485 = vadd.f32 0.0, %v1484
    %v1486 = vpop.f32.mrb[0].mxu0
    %1487 = vmatprep.mubr.bf16.mxu0 0
    %1488 = vmatmul.mubr.bf16.gmra.mrb[0].mxu0 %v1321
    %v1489 = vpop.f32.mrb[0].mxu0
    %v1490 = vadd.f32 0.0, %v1489
    %v1491 = vpop.f32.mrb[0].mxu0
    %v1492 = vpop.f32.mrb[0].mxu0
    %v1493 = vadd.f32 0.0, %v1492
    %v1494 = vpop.f32.mrb[0].mxu0
    %1495 = vmatprep.mubr.bf16.mxu0 0
    %1496 = vmatmul.mubr.bf16.gmra.mrb[0].mxu0 %v1322
    %v1497 = vpop.f32.mrb[0].mxu0
    %v1498 = vadd.f32 0.0, %v1497
    %v1499 = vpop.f32.mrb[0].mxu0
    %v1500 = vpop.f32.mrb[0].mxu0
    %v1501 = vadd.f32 0.0, %v1500
    %v1502 = vpop.f32.mrb[0].mxu0
    %1503 = vmatprep.mubr.bf16.mxu0 0
    %1504 = vmatmul.mubr.bf16.gmra.mrb[0].mxu0 %v1323
    %v1505 = vpop.f32.mrb[0].mxu0
    %v1506 = vadd.f32 0.0, %v1505
    %v1507 = vpop.f32.mrb[0].mxu0
    %v1508 = vpop.f32.mrb[0].mxu0
    %v1509 = vadd.f32 0.0, %v1508
    %v1510 = vpop.f32.mrb[0].mxu0
    %1511 = vmatprep.mubr.bf16.mxu0 0
    %1512 = vmatmul.mubr.bf16.gmra.mrb[0].mxu0 %v1324
    %v1513 = vpop.f32.mrb[0].mxu0
    %v1514 = vadd.f32 0.0, %v1513
    %v1515 = vpop.f32.mrb[0].mxu0
    %v1516 = vpop.f32.mrb[0].mxu0
    %v1517 = vadd.f32 0.0, %v1516
    %v1518 = vpop.f32.mrb[0].mxu0
    %1519 = vmatprep.mubr.bf16.mxu0 0
    %1520 = vmatmul.mubr.bf16.gmra.mrb[0].mxu0 %v1325
    %v1521 = vpop.f32.mrb[0].mxu0
    %v1522 = vadd.f32 0.0, %v1521
    %v1523 = vpop.f32.mrb[0].mxu0
    %v1524 = vpop.f32.mrb[0].mxu0
    %v1525 = vadd.f32 0.0, %v1524
    %v1526 = vpop.f32.mrb[0].mxu0
    %1527 = vmatprep.mubr.bf16.mxu0 0
    %1528 = vmatmul.mubr.bf16.gmra.mrb[0].mxu0 %v1326
    %v1529 = vpop.f32.mrb[0].mxu0
    %v1530 = vadd.f32 0.0, %v1529
    %v1531 = vpop.f32.mrb[0].mxu0
    %v1532 = vpop.f32.mrb[0].mxu0
    %v1533 = vadd.f32 0.0, %v1532
    %v1534 = vpop.f32.mrb[0].mxu0
    %1535 = vdwg.mxu0
    %v1536 = vmax.f32 %v1410, 0.0
    %v1537 = vmax.f32 %v1413, 0.0
    %v1538 = vmax.f32 %v1418, 0.0
    %v1539 = vmax.f32 %v1421, 0.0
    %v1540 = vmax.f32 %v1426, 0.0
    %v1541 = vmax.f32 %v1429, 0.0
    %v1542 = vmax.f32 %v1434, 0.0
    %v1543 = vmax.f32 %v1437, 0.0
    %v1544 = vmax.f32 %v1442, 0.0
    %v1545 = vmax.f32 %v1445, 0.0
    %v1546 = vmax.f32 %v1450, 0.0
    %v1547 = vmax.f32 %v1453, 0.0
    %v1548 = vmax.f32 %v1458, 0.0
    %v1549 = vmax.f32 %v1461, 0.0
    %v1550 = vmax.f32 %v1466, 0.0
    %v1551 = vmax.f32 %v1469, 0.0
    %v1552 = vmax.f32 %v1474, 0.0
    %v1553 = vmax.f32 %v1477, 0.0
    %v1554 = vmax.f32 %v1482, 0.0
    %v1555 = vmax.f32 %v1485, 0.0
    %v1556 = vmax.f32 %v1490, 0.0
    %v1557 = vmax.f32 %v1493, 0.0
    %v1558 = vmax.f32 %v1498, 0.0
    %v1559 = vmax.f32 %v1501, 0.0
    %v1560 = vmax.f32 %v1506, 0.0
    %v1561 = vmax.f32 %v1509, 0.0
    %v1562 = vmax.f32 %v1514, 0.0
    %v1563 = vmax.f32 %v1517, 0.0
    %v1564 = vmax.f32 %v1522, 0.0
    %v1565 = vmax.f32 %v1525, 0.0
    %v1566 = vmax.f32 %v1530, 0.0
    %v1567 = vmax.f32 %v1533, 0.0
    %v1568 = vpack.c.bf16 %v1537, %v1536
    %v1569 = vpack.c.bf16 %v1539, %v1538
    %v1570 = vpack.c.bf16 %v1541, %v1540
    %v1571 = vpack.c.bf16 %v1543, %v1542
    %v1572 = vpack.c.bf16 %v1545, %v1544
    %v1573 = vpack.c.bf16 %v1547, %v1546
    %v1574 = vpack.c.bf16 %v1549, %v1548
    %v1575 = vpack.c.bf16 %v1551, %v1550
    %v1576 = vpack.c.bf16 %v1553, %v1552
    %v1577 = vpack.c.bf16 %v1555, %v1554
    %v1578 = vpack.c.bf16 %v1557, %v1556
    %v1579 = vpack.c.bf16 %v1559, %v1558
    %v1580 = vpack.c.bf16 %v1561, %v1560
    %v1581 = vpack.c.bf16 %v1563, %v1562
    %v1582 = vpack.c.bf16 %v1565, %v1564
    %v1583 = vpack.c.bf16 %v1567, %v1566
    %v1600 = vunpack.c.l.b16 %v1568
    %v1601 = vunpack.c.h.b16 %v1568
    %v1602 = vunpack.c.l.b16 %v1569
    %v1603 = vunpack.c.h.b16 %v1569
    %v1604 = vunpack.c.l.b16 %v1570
    %v1605 = vunpack.c.h.b16 %v1570
    %v1606 = vunpack.c.l.b16 %v1571
    %v1607 = vunpack.c.h.b16 %v1571
    %v1608 = vunpack.c.l.b16 %v1572
    %v1609 = vunpack.c.h.b16 %v1572
    %v1610 = vunpack.c.l.b16 %v1573
    %v1611 = vunpack.c.h.b16 %v1573
    %v1612 = vunpack.c.l.b16 %v1574
    %v1613 = vunpack.c.h.b16 %v1574
    %v1614 = vunpack.c.l.b16 %v1575
    %v1615 = vunpack.c.h.b16 %v1575
    %v1616 = vunpack.c.l.b16 %v1576
    %v1617 = vunpack.c.h.b16 %v1576
    %v1618 = vunpack.c.l.b16 %v1577
    %v1619 = vunpack.c.h.b16 %v1577
    %v1620 = vunpack.c.l.b16 %v1578
    %v1621 = vunpack.c.h.b16 %v1578
    %v1622 = vunpack.c.l.b16 %v1579
    %v1623 = vunpack.c.h.b16 %v1579
    %v1624 = vunpack.c.l.b16 %v1580
    %v1625 = vunpack.c.h.b16 %v1580
    %v1626 = vunpack.c.l.b16 %v1581
    %v1627 = vunpack.c.h.b16 %v1581
    %v1628 = vunpack.c.l.b16 %v1582
    %v1629 = vunpack.c.h.b16 %v1582
    %v1630 = vunpack.c.l.b16 %v1583
    %v1631 = vunpack.c.h.b16 %v1583
    %v1632 = vpack.c.b16 %v1600, %v1600
    %v1633 = vpack.c.b16 %v1601, %v1601
    %v1634 = vpack.c.b16 %v1602, %v1602
    %v1635 = vpack.c.b16 %v1603, %v1603
    %v1636 = vpack.c.b16 %v1604, %v1604
    %v1637 = vpack.c.b16 %v1605, %v1605
    %v1638 = vpack.c.b16 %v1606, %v1606
    %v1639 = vpack.c.b16 %v1607, %v1607
    %v1640 = vpack.c.b16 %v1608, %v1608
    %v1641 = vpack.c.b16 %v1609, %v1609
    %v1642 = vpack.c.b16 %v1610, %v1610
    %v1643 = vpack.c.b16 %v1611, %v1611
    %v1644 = vpack.c.b16 %v1612, %v1612
    %v1645 = vpack.c.b16 %v1613, %v1613
    %v1646 = vpack.c.b16 %v1614, %v1614
    %v1647 = vpack.c.b16 %v1615, %v1615
    %v1648 = vpack.c.b16 %v1616, %v1616
    %v1649 = vpack.c.b16 %v1617, %v1617
    %v1650 = vpack.c.b16 %v1618, %v1618
    %v1651 = vpack.c.b16 %v1619, %v1619
    %v1652 = vpack.c.b16 %v1620, %v1620
    %v1653 = vpack.c.b16 %v1621, %v1621
    %v1654 = vpack.c.b16 %v1622, %v1622
    %v1655 = vpack.c.b16 %v1623, %v1623
    %v1656 = vpack.c.b16 %v1624, %v1624
    %v1657 = vpack.c.b16 %v1625, %v1625
    %v1658 = vpack.c.b16 %v1626, %v1626
    %v1659 = vpack.c.b16 %v1627, %v1627
    %v1660 = vpack.c.b16 %v1628, %v1628
    %v1661 = vpack.c.b16 %v1629, %v1629
    %v1662 = vpack.c.b16 %v1630, %v1630
    %v1663 = vpack.c.b16 %v1631, %v1631
    %1696 = vst [vmem:[#allocation10] sm:$0xf] %v1632
    %1697 = vst [vmem:[#allocation10 + $0x4] sm:$0xf] %v1633
    %1698 = vst [vmem:[#allocation10 + $0x8] sm:$0xf] %v1634
    %1699 = vst [vmem:[#allocation10 + $0xc] sm:$0xf] %v1635
    %1700 = vst [vmem:[#allocation10 + $0x10] sm:$0xf] %v1636
    %1701 = vst [vmem:[#allocation10 + $0x14] sm:$0xf] %v1637
    %1702 = vst [vmem:[#allocation10 + $0x18] sm:$0xf] %v1638
    %1703 = vst [vmem:[#allocation10 + $0x1c] sm:$0xf] %v1639
    %1704 = vst [vmem:[#allocation10 + $0x20] sm:$0xf] %v1640
    %1705 = vst [vmem:[#allocation10 + $0x24] sm:$0xf] %v1641
    %1706 = vst [vmem:[#allocation10 + $0x28] sm:$0xf] %v1642
    %1707 = vst [vmem:[#allocation10 + $0x2c] sm:$0xf] %v1643
    %1708 = vst [vmem:[#allocation10 + $0x30] sm:$0xf] %v1644
    %1709 = vst [vmem:[#allocation10 + $0x34] sm:$0xf] %v1645
    %1710 = vst [vmem:[#allocation10 + $0x38] sm:$0xf] %v1646
    %1711 = vst [vmem:[#allocation10 + $0x3c] sm:$0xf] %v1647
    %1712 = vst [vmem:[#allocation10 + $0x40] sm:$0xf] %v1648
    %1713 = vst [vmem:[#allocation10 + $0x44] sm:$0xf] %v1649
    %1714 = vst [vmem:[#allocation10 + $0x48] sm:$0xf] %v1650
    %1715 = vst [vmem:[#allocation10 + $0x4c] sm:$0xf] %v1651
    %1716 = vst [vmem:[#allocation10 + $0x50] sm:$0xf] %v1652
    %1717 = vst [vmem:[#allocation10 + $0x54] sm:$0xf] %v1653
    %1718 = vst [vmem:[#allocation10 + $0x58] sm:$0xf] %v1654
    %1719 = vst [vmem:[#allocation10 + $0x5c] sm:$0xf] %v1655
    %1720 = vst [vmem:[#allocation10 + $0x60] sm:$0xf] %v1656
    %1721 = vst [vmem:[#allocation10 + $0x64] sm:$0xf] %v1657
    %1722 = vst [vmem:[#allocation10 + $0x68] sm:$0xf] %v1658
    %1723 = vst [vmem:[#allocation10 + $0x6c] sm:$0xf] %v1659
    %1724 = vst [vmem:[#allocation10 + $0x70] sm:$0xf] %v1660
    %1725 = vst [vmem:[#allocation10 + $0x74] sm:$0xf] %v1661
    %1726 = vst [vmem:[#allocation10 + $0x78] sm:$0xf] %v1662
    %1727 = vst [vmem:[#allocation10 + $0x7c] sm:$0xf] %v1663
    %v1728 = vadd.f32 %v1536, %v1537
    %v1729 = vrot.slane %v1728, 4
    %v1730 = vadd.f32 %v1728, %v1729
    %v1731 = vrot.slane %v1730, 2
    %v1732 = vadd.f32 %v1730, %v1731
    %v1733 = vrot.slane %v1732, 1
    %v1734 = vadd.f32 %v1732, %v1733
    %v1735 = vadd.f32 %v1538, %v1539
    %v1736 = vrot.slane %v1735, 4
    %v1737 = vadd.f32 %v1735, %v1736
    %v1738 = vrot.slane %v1737, 2
    %v1739 = vadd.f32 %v1737, %v1738
    %v1740 = vrot.slane %v1739, 1
    %v1741 = vadd.f32 %v1739, %v1740
    %v1742 = vadd.f32 %v1540, %v1541
    %v1743 = vrot.slane %v1742, 4
    %v1744 = vadd.f32 %v1742, %v1743
    %v1745 = vrot.slane %v1744, 2
    %v1746 = vadd.f32 %v1744, %v1745
    %v1747 = vrot.slane %v1746, 1
    %v1748 = vadd.f32 %v1746, %v1747
    %v1749 = vadd.f32 %v1542, %v1543
    %v1750 = vrot.slane %v1749, 4
    %v1751 = vadd.f32 %v1749, %v1750
    %v1752 = vrot.slane %v1751, 2
    %v1753 = vadd.f32 %v1751, %v1752
    %v1754 = vrot.slane %v1753, 1
    %v1755 = vadd.f32 %v1753, %v1754
    %v1756 = vadd.f32 %v1544, %v1545
    %v1757 = vrot.slane %v1756, 4
    %v1758 = vadd.f32 %v1756, %v1757
    %v1759 = vrot.slane %v1758, 2
    %v1760 = vadd.f32 %v1758, %v1759
    %v1761 = vrot.slane %v1760, 1
    %v1762 = vadd.f32 %v1760, %v1761
    %v1763 = vadd.f32 %v1546, %v1547
    %v1764 = vrot.slane %v1763, 4
    %v1765 = vadd.f32 %v1763, %v1764
    %v1766 = vrot.slane %v1765, 2
    %v1767 = vadd.f32 %v1765, %v1766
    %v1768 = vrot.slane %v1767, 1
    %v1769 = vadd.f32 %v1767, %v1768
    %v1770 = vadd.f32 %v1548, %v1549
    %v1771 = vrot.slane %v1770, 4
    %v1772 = vadd.f32 %v1770, %v1771
    %v1773 = vrot.slane %v1772, 2
    %v1774 = vadd.f32 %v1772, %v1773
    %v1775 = vrot.slane %v1774, 1
    %v1776 = vadd.f32 %v1774, %v1775
    %v1777 = vadd.f32 %v1550, %v1551
    %v1778 = vrot.slane %v1777, 4
    %v1779 = vadd.f32 %v1777, %v1778
    %v1780 = vrot.slane %v1779, 2
    %v1781 = vadd.f32 %v1779, %v1780
    %v1782 = vrot.slane %v1781, 1
    %v1783 = vadd.f32 %v1781, %v1782
    %v1784 = vadd.f32 %v1552, %v1553
    %v1785 = vrot.slane %v1784, 4
    %v1786 = vadd.f32 %v1784, %v1785
    %v1787 = vrot.slane %v1786, 2
    %v1788 = vadd.f32 %v1786, %v1787
    %v1789 = vrot.slane %v1788, 1
    %v1790 = vadd.f32 %v1788, %v1789
    %v1791 = vadd.f32 %v1554, %v1555
    %v1792 = vrot.slane %v1791, 4
    %v1793 = vadd.f32 %v1791, %v1792
    %v1794 = vrot.slane %v1793, 2
    %v1795 = vadd.f32 %v1793, %v1794
    %v1796 = vrot.slane %v1795, 1
    %v1797 = vadd.f32 %v1795, %v1796
    %v1798 = vadd.f32 %v1556, %v1557
    %v1799 = vrot.slane %v1798, 4
    %v1800 = vadd.f32 %v1798, %v1799
    %v1801 = vrot.slane %v1800, 2
    %v1802 = vadd.f32 %v1800, %v1801
    %v1803 = vrot.slane %v1802, 1
    %v1804 = vadd.f32 %v1802, %v1803
    %v1805 = vadd.f32 %v1558, %v1559
    %v1806 = vrot.slane %v1805, 4
    %v1807 = vadd.f32 %v1805, %v1806
    %v1808 = vrot.slane %v1807, 2
    %v1809 = vadd.f32 %v1807, %v1808
    %v1810 = vrot.slane %v1809, 1
    %v1811 = vadd.f32 %v1809, %v1810
    %v1812 = vadd.f32 %v1560, %v1561
    %v1813 = vrot.slane %v1812, 4
    %v1814 = vadd.f32 %v1812, %v1813
    %v1815 = vrot.slane %v1814, 2
    %v1816 = vadd.f32 %v1814, %v1815
    %v1817 = vrot.slane %v1816, 1
    %v1818 = vadd.f32 %v1816, %v1817
    %v1819 = vadd.f32 %v1562, %v1563
    %v1820 = vrot.slane %v1819, 4
    %v1821 = vadd.f32 %v1819, %v1820
    %v1822 = vrot.slane %v1821, 2
    %v1823 = vadd.f32 %v1821, %v1822
    %v1824 = vrot.slane %v1823, 1
    %v1825 = vadd.f32 %v1823, %v1824
    %v1826 = vadd.f32 %v1564, %v1565
    %v1827 = vrot.slane %v1826, 4
    %v1828 = vadd.f32 %v1826, %v1827
    %v1829 = vrot.slane %v1828, 2
    %v1830 = vadd.f32 %v1828, %v1829
    %v1831 = vrot.slane %v1830, 1
    %v1832 = vadd.f32 %v1830, %v1831
    %v1833 = vadd.f32 %v1566, %v1567
    %v1834 = vrot.slane %v1833, 4
    %v1835 = vadd.f32 %v1833, %v1834
    %v1836 = vrot.slane %v1835, 2
    %v1837 = vadd.f32 %v1835, %v1836
    %v1838 = vrot.slane %v1837, 1
    %v1839 = vadd.f32 %v1837, %v1838
    %v1840 = vsub.f32 %v1734, %v1790
    %v1841 = vsub.f32 %v1741, %v1797
    %v1842 = vsub.f32 %v1748, %v1804
    %v1843 = vsub.f32 %v1755, %v1811
    %v1844 = vsub.f32 %v1762, %v1818
    %v1845 = vsub.f32 %v1769, %v1825
    %v1846 = vsub.f32 %v1776, %v1832
    %v1847 = vsub.f32 %v1783, %v1839
    %v1848 = vmul.f32 %v1840, %v1840
    %v1849 = vmul.f32 %v1841, %v1841
    %v1850 = vmul.f32 %v1842, %v1842
    %v1851 = vmul.f32 %v1843, %v1843
    %v1852 = vmul.f32 %v1844, %v1844
    %v1853 = vmul.f32 %v1845, %v1845
    %v1854 = vmul.f32 %v1846, %v1846
    %v1855 = vmul.f32 %v1847, %v1847
    %vm1864 = vcmask 1041409
    %v1865 = vsel %vm1864, %v1849, %v1848
    %vm1866 = vcmask 1042434
    %v1867 = vsel %vm1866, %v1850, %v1865
    %vm1868 = vcmask 1043459
    %v1869 = vsel %vm1868, %v1851, %v1867
    %vm1870 = vcmask 1044484
    %v1871 = vsel %vm1870, %v1852, %v1869
    %vm1872 = vcmask 1045509
    %v1873 = vsel %vm1872, %v1853, %v1871
    %vm1874 = vcmask 1046534
    %v1875 = vsel %vm1874, %v1854, %v1873
    %vm1876 = vcmask 1047559
    %v1877 = vsel %vm1876, %v1855, %v1875
    %1879 = vst [vmem:[#allocation11] sm:$0xff] %v1877
    // Predicated region
    $region34: #{tpu_custom_call.1} parent=1 // pred_check
      _
    $region35: #{tpu_custom_call.1} parent=1 // pred_check_branch
      %1881 = sbr.rel (0) target = $region37
    $region36: #{tpu_custom_call.1} parent=1 // pred_region
      %s1883 = ssub.s32 2048, 2048
      %1884 = vsyncadd [#allocation4], %s1883
      %s1885 = sshll.u32 [#allocation10], 4
      %s1886 = int_to_ptr.vmem [resolvable:$true] %s1885
      %1891 = dma.vmem_to_hbm [thread:$0]  %s1886, 2048, %s4, [#allocation4], 64, 64, 4
    $region37: #{tpu_custom_call.1} parent=1 // pred_fallthru
      _
    // Predicated region
    $region38: #{tpu_custom_call.1} parent=1 // pred_check
      _
    $region39: #{tpu_custom_call.1} parent=1 // pred_check_branch
      %1893 = sbr.rel (0) target = $region41
    $region40: #{tpu_custom_call.1} parent=1 // pred_region
      %s1895 = ssub.s32 128, 128
      %1896 = vsyncadd [#allocation12], %s1895
      %s1898 = sshll.u32 [#allocation11], 4
      %s1899 = int_to_ptr.vmem [resolvable:$true] %s1898
      %1901 = dma.vmem_to_hbm [thread:$0]  %s1899, 128, %s5, [#allocation12]
    $region41: #{tpu_custom_call.1} parent=1 // pred_fallthru
      _
    // Predicated region
    $region42: #{tpu_custom_call.1} parent=1 // pred_check
      _
    $region43: #{tpu_custom_call.1} parent=1 // pred_check_branch
      %1903 = sbr.rel (0) target = $region45
    $region44: #{tpu_custom_call.1} parent=1 // pred_region
      %1904 = dma.done [#allocation4], 2048
    $region45: #{tpu_custom_call.1} parent=1 // pred_fallthru
      _
    // Predicated region
    $region46: #{tpu_custom_call.1} parent=1 // pred_check
      _
    $region47: #{tpu_custom_call.1} parent=1 // pred_check_branch
      %1906 = sbr.rel (0) target = $region49
    $region48: #{tpu_custom_call.1} parent=1 // pred_region
      %1907 = dma.done [#allocation12], 128
    $region49: #{tpu_custom_call.1} parent=1 // pred_fallthru
      _
    %1908 = vsyncpa [#allocation3], 1
    %1909 = vsyncpa [#allocation6], 1
    %1910 = vsyncpa [#allocation9], 1
    %1911 = vsyncpa [#allocation4], 1
    %1912 = vsyncpa [#allocation12], 1

</llo_original>
